<compile_context>
chip_gen: v7x
topology: tpu7x:2x2x1
jax: 0.10.0
libtpu: 0.0.40
codegen_flags: <defaults>
</compile_context>

<pallas_src>
import functools

import jax
import jax.numpy as jnp
import numpy as np
from jax import lax
from jax.experimental import pallas as pl
from jax.experimental.pallas import tpu as pltpu

_EPS = 1e-5
_KS = (7, 5, 3)
_HALO = 16      # halo rows fetched from each neighbouring tile (bf16-tile aligned)
_C = 128        # lane-padded channel width


def _conv_stats_kernel(cur_ref, left_ref, right_ref, scale_ref, shift_ref,
                       w_ref, b_ref, y_ref, stats_ref, win_ref, acc_ref, *,
                       K, apply_prev_bn):
    """One (batch, L-tile) step of: [prev-layer BN+ReLU] -> Conv1d("same") -> +bias.

    Writes the pre-BN conv output (bf16) and per-tile per-channel partial
    (sum, sum-of-squares) used by the wrapper to form this layer's BN stats.
    """
    t = pl.program_id(1)
    num_t = pl.num_programs(1)
    p = K // 2
    TL = cur_ref.shape[1]
    W = win_ref.shape[0]

    sc = scale_ref[...]                       # (1, C) broadcasts hoisted
    sf = shift_ref[...]

    def prev_act(v):
        # Previous layer's BatchNorm + ReLU fused into this layer's read
        # (layer 1 reads the raw input -> plain f32 upcast).
        v = v.astype(jnp.float32)
        if apply_prev_bn:
            v = jnp.maximum(v * sc + sf, 0.0)
        return v

    # Assemble the haloed window once per tile (aligned stores only).  "same"
    # zero padding: the halo pieces of the first / last tile lie outside [0, L)
    # and are masked to zero *after* the activation (handles tile boundaries).
    win_ref[0:_HALO, :] = prev_act(left_ref[0]) * (t > 0).astype(jnp.float32)
    win_ref[_HALO:_HALO + TL, :] = prev_act(cur_ref[0])
    win_ref[_HALO + TL:W, :] = (prev_act(right_ref[0])
                                * (t < num_t - 1).astype(jnp.float32))
    win = win_ref[...]

    # Conv taps via XLU rolls + aligned static slices (no misaligned sublane
    # slice copies); rolled wrap-around rows never land inside
    # [_HALO, _HALO + TL) because |p - k| <= 3 < _HALO.  MXU operands are bf16,
    # accumulation is f32 in a VMEM scratch accumulator.
    acc_ref[...] = jnp.zeros_like(acc_ref)
    for k in range(K):                        # K in {7, 5, 3}: static unroll
        sh = (p - k) % W
        src = win if sh == 0 else pltpu.roll(win, shift=sh, axis=0)
        xk = src[_HALO:_HALO + TL, :].astype(jnp.bfloat16)
        acc_ref[...] += jnp.dot(xk, w_ref[k], preferred_element_type=jnp.float32)

    acc = acc_ref[...] + b_ref[...]           # conv bias, one (1, C) broadcast
    y_ref[0] = acc.astype(y_ref.dtype)        # pre-BN activation (bf16) -> HBM

    # Per-tile per-channel BatchNorm partials (f32); cross-tile reduction is a
    # tiny op in the wrapper.  TODO(synk): per-tile mean subtraction / Welford
    # if E[x^2]-mean^2 cancellation ever matters at very large N*L.
    stats_ref[0, 0:1, :] = jnp.sum(acc, axis=0, keepdims=True)
    stats_ref[0, 1:2, :] = jnp.sum(acc * acc, axis=0, keepdims=True)


def _bn_relu_kernel(y_ref, scale_ref, shift_ref, o_ref):
    """Final layer's BatchNorm scale/shift + ReLU (lane-dense f32 stores)."""
    v = y_ref[0].astype(jnp.float32) * scale_ref[...] + shift_ref[...]
    o_ref[0] = jnp.maximum(v, 0.0).astype(o_ref.dtype)


def _conv_bn_layer(a, scale_prev, shift_prev, w, b, *, K, apply_prev_bn,
                   tile_rows, compiler_params):
    """One conv layer, tiled over (batch, L-tiles).

    Returns (pre-BN activation [bf16, NLC], per-tile BN partial sums [f32])."""
    N, L, C = a.shape
    TL = tile_rows
    T = L // TL
    r = TL // _HALO                           # halo blocks per tile

    def left_idx(n, t):                       # last _HALO rows of the prev tile
        return (n, jnp.maximum(t * r - 1, 0), 0)

    def right_idx(n, t):                      # first _HALO rows of the next tile
        return (n, jnp.minimum((t + 1) * r, L // _HALO - 1), 0)

    y, stats = pl.pallas_call(
        functools.partial(_conv_stats_kernel, K=K, apply_prev_bn=apply_prev_bn),
        grid=(N, T),
        in_specs=[
            pl.BlockSpec((1, TL, C), lambda n, t: (n, t, 0)),          # current tile
            pl.BlockSpec((1, _HALO, C), left_idx),                     # left halo
            pl.BlockSpec((1, _HALO, C), right_idx),                    # right halo
            pl.BlockSpec((1, C), lambda n, t: (0, 0)),                 # prev BN scale
            pl.BlockSpec((1, C), lambda n, t: (0, 0)),                 # prev BN shift
            pl.BlockSpec(w.shape, lambda n, t: (0, 0, 0)),             # weights (K,C,C)
            pl.BlockSpec((1, C), lambda n, t: (0, 0)),                 # bias
        ],
        out_specs=[
            pl.BlockSpec((1, TL, C), lambda n, t: (n, t, 0)),          # pre-BN act
            pl.BlockSpec((1, 2, C), lambda n, t: (n * T + t, 0, 0)),   # BN partials
        ],
        out_shape=(
            jax.ShapeDtypeStruct((N, L, C), jnp.bfloat16),
            jax.ShapeDtypeStruct((N * T, 2, C), jnp.float32),
        ),
        scratch_shapes=[
            pltpu.VMEM((TL + 2 * _HALO, C), jnp.float32),              # haloed window
            pltpu.VMEM((TL, C), jnp.float32),                          # f32 accumulator
        ],
        compiler_params=compiler_params,
    )(a, a, a, scale_prev, shift_prev, w, b)
    return y, stats


def regular_conv_encoder(x_ncl, params, *, tile_rows=512, vmem_limit_bytes=None):
    """x_ncl: (N, C_in, L) float32, PyTorch-layout input (NCL).

    Per-generation sizing guidance (both arguments are exposed for this):
      v5e/v6e (128 MiB VMEM): tile_rows 1024-2048, vmem_limit_bytes ~96 MiB
      v7x     ( 64 MiB VMEM): tile_rows <= 1024,   vmem_limit_bytes <= 48 MiB
    """
    N, C_in, L = x_ncl.shape
    tl = min(tile_rows, L)
    assert L % _HALO == 0, "sequence length must be a multiple of 16"
    assert tl % _HALO == 0 and L % tl == 0, "tile_rows must divide L, multiple of 16"
    C_lat = params["w3"].shape[2]

    # NCL -> NLC, lane-pad channels to 128, bf16 storage (matmul-native dtype).
    x = jnp.transpose(x_ncl, (0, 2, 1)).astype(jnp.float32)
    x = jnp.pad(x, ((0, 0), (0, 0), (0, _C - C_in))).astype(jnp.bfloat16)

    def pad_w(w):  # (K, Cin, Cout) -> (K, 128, 128) bf16, zero-filled
        k, ci, co = w.shape
        return jnp.pad(w.astype(jnp.float32),
                       ((0, 0), (0, _C - ci), (0, _C - co))).astype(jnp.bfloat16)

    def pad_v(v):  # (C,) -> (1, 128) f32, zero-filled
        return jnp.pad(v.astype(jnp.float32), (0, _C - v.shape[0])).reshape(1, _C)

    # No accumulators are carried across the grid (BN partials are per-tile
    # outputs), so both grid axes are "parallel" -> shardable across v7x's two
    # TensorCores.
    cp = pltpu.CompilerParams(dimension_semantics=("parallel", "parallel"),
                              vmem_limit_bytes=vmem_limit_bytes)

    count = float(N * L)
    a = x
    scale = jnp.zeros((1, _C), jnp.float32)    # identity for layer 1 (unused)
    shift = jnp.zeros((1, _C), jnp.float32)
    for i, K in enumerate(_KS, start=1):
        a, stats = _conv_bn_layer(a, scale, shift,
                                  pad_w(params[f"w{i}"]), pad_v(params[f"b{i}"]),
                                  K=K, apply_prev_bn=(i > 1),
                                  tile_rows=tl, compiler_params=cp)
        # Tiny cross-tile BN reduction + scale/shift math (f32, in XLA).
        s = jnp.sum(stats, axis=0)                                  # (2, C)
        mean = s[0] / count
        var = jnp.maximum(s[1] / count - mean * mean, 0.0)
        scale = pad_v(params[f"g{i}"]) * lax.rsqrt(var + _EPS)      # (1, C)
        shift = pad_v(params[f"be{i}"]) - mean * scale              # (1, C)

    # Final layer's BN + ReLU apply (its stats only exist after all its tiles).
    T = L // tl
    out = pl.pallas_call(
        _bn_relu_kernel,
        grid=(N, T),
        in_specs=[pl.BlockSpec((1, tl, _C), lambda n, t: (n, t, 0)),
                  pl.BlockSpec((1, _C), lambda n, t: (0, 0)),
                  pl.BlockSpec((1, _C), lambda n, t: (0, 0))],
        out_specs=pl.BlockSpec((1, tl, _C), lambda n, t: (n, t, 0)),
        out_shape=jax.ShapeDtypeStruct((N, L, _C), jnp.float32),
        compiler_params=cp,
    )(a, scale, shift)

    # Drop lane padding, back to NCL.
    return jnp.transpose(out[:, :, :C_lat], (0, 2, 1))


def init_params(key, num_features, latent_features, num_conv_filters=32):
    """Deterministic synthetic parameters (shapes match the PyTorch module)."""
    chans = [(num_features, num_conv_filters),
             (num_conv_filters, num_conv_filters),
             (num_conv_filters, latent_features)]
    params = {}
    for i, ((cin, cout), k) in enumerate(zip(chans, _KS), start=1):
        key, kw, kb, kg, kbe = jax.random.split(key, 5)
        bound = 1.0 / np.sqrt(cin * k)
        # stored as (K, Cin, Cout), i.e. torch (Cout, Cin, K) transposed
        params[f"w{i}"] = jax.random.uniform(kw, (k, cin, cout), jnp.float32, -bound, bound)
        params[f"b{i}"] = jax.random.uniform(kb, (cout,), jnp.float32, -bound, bound)
        params[f"g{i}"] = 1.0 + 0.1 * jax.random.normal(kg, (cout,), jnp.float32)
        params[f"be{i}"] = 0.1 * jax.random.normal(kbe, (cout,), jnp.float32)
    return params


def reference_forward(x_ncl, params):
    """Independent plain-JAX f32 reference (lax.conv) of the same forward."""
    h = x_ncl.astype(jnp.float32)
    for i, k in enumerate(_KS, start=1):
        w = jnp.transpose(params[f"w{i}"], (2, 1, 0))  # (Cout, Cin, K)
        pad = k // 2
        h = lax.conv_general_dilated(h, w, window_strides=(1,),
                                     padding=[(pad, pad)],
                                     dimension_numbers=("NCH", "OIH", "NCH"))
        h = h + params[f"b{i}"][None, :, None]
        mean = jnp.mean(h, axis=(0, 2), keepdims=True)
        var = jnp.mean((h - mean) ** 2, axis=(0, 2), keepdims=True)
        h = (h - mean) / jnp.sqrt(var + _EPS)
        h = h * params[f"g{i}"][None, :, None] + params[f"be{i}"][None, :, None]
        h = jnp.maximum(h, 0.0)
    return h


if __name__ == "__main__":
    N, C_in, L = 2, 4, 64          # batch, num_features, sequence length
    latent = 8                      # latent_features
    key = jax.random.PRNGKey(0)
    key, kx = jax.random.split(key)
    x = jax.random.normal(kx, (N, C_in, L), jnp.float32)
    params = init_params(key, C_in, latent, num_conv_filters=32)

    # tile_rows=16 -> 4 L-tiles per batch element: exercises the tiled grid,
    # cross-tile halo exchange and the edge ("same" padding) masking.
    out = jax.block_until_ready(regular_conv_encoder(x, params, tile_rows=16))
    ref = jax.block_until_ready(reference_forward(x, params))

    assert out.shape == (N, latent, L), out.shape
    # Tolerance accounts for bf16 HBM intermediates / bf16 MXU operands
    # (f32 accumulation and f32 BatchNorm statistics).
    np.testing.assert_allclose(np.asarray(out), np.asarray(ref), rtol=5e-2, atol=5e-2)
    print("KERNEL_OK")
</pallas_src>

<mosaic_0001>
module attributes {stable_mosaic.version = 11 : i64} {
  func.func @_conv_stats_kernel(%arg0: i32, %arg1: i32, %arg2: memref<1x16x128xbf16, #tpu.memory_space<vmem>>, %arg3: memref<1x16x128xbf16, #tpu.memory_space<vmem>>, %arg4: memref<1x16x128xbf16, #tpu.memory_space<vmem>>, %arg5: memref<1x128xf32, #tpu.memory_space<vmem>>, %arg6: memref<1x128xf32, #tpu.memory_space<vmem>>, %arg7: memref<7x128x128xbf16, #tpu.memory_space<vmem>>, %arg8: memref<1x128xf32, #tpu.memory_space<vmem>>, %arg9: memref<1x16x128xbf16, #tpu.memory_space<vmem>>, %arg10: memref<1x2x128xf32, #tpu.memory_space<vmem>>, %arg11: memref<48x128xf32, #tpu.memory_space<vmem>>, %arg12: memref<16x128xf32, #tpu.memory_space<vmem>>) attributes {dimension_semantics = [#tpu.dimension_semantics<parallel>, #tpu.dimension_semantics<parallel>], iteration_bounds = array<i64: 2, 4>, scalar_prefetch = 0 : i64, scratch_operands = 2 : i64, tpu.core_type = #tpu.core_type<tc>, window_params = [{transform_indices = @transform_0, window_bounds = array<i64: 1, 16, 128>}, {transform_indices = @transform_1, window_bounds = array<i64: 1, 16, 128>}, {transform_indices = @transform_2, window_bounds = array<i64: 1, 16, 128>}, {pipeline_mode = #tpu.pipeline_mode<synchronous>, transform_indices = @transform_3, window_bounds = array<i64: 1, 128>}, {pipeline_mode = #tpu.pipeline_mode<synchronous>, transform_indices = @transform_4, window_bounds = array<i64: 1, 128>}, {pipeline_mode = #tpu.pipeline_mode<synchronous>, transform_indices = @transform_5, window_bounds = array<i64: 7, 128, 128>}, {pipeline_mode = #tpu.pipeline_mode<synchronous>, transform_indices = @transform_6, window_bounds = array<i64: 1, 128>}, {transform_indices = @transform_7, window_bounds = array<i64: 1, 16, 128>}, {transform_indices = @transform_8, window_bounds = array<i64: 1, 2, 128>}]} {
    %c0 = arith.constant 0 : index
    %c0_0 = arith.constant 0 : index
    %c0_1 = arith.constant 0 : index
    %0 = vector.load %arg3[%c0, %c0_0, %c0_1] : memref<1x16x128xbf16, #tpu.memory_space<vmem>>, vector<1x16x128xbf16>
    %1 = vector.shape_cast %0 : vector<1x16x128xbf16> to vector<16x128xbf16>
    %2 = arith.extf %1 : vector<16x128xbf16> to vector<16x128xf32>
    %c0_i32 = arith.constant 0 : i32
    %3 = arith.cmpi sgt, %arg1, %c0_i32 : i32
    %4 = arith.extui %3 : i1 to i32
    %5 = arith.sitofp %4 : i32 to f32
    %6 = vector.broadcast %5 : f32 to vector<16x128xf32>
    %7 = arith.mulf %2, %6 : vector<16x128xf32>
    %c0_2 = arith.constant 0 : index
    %c0_3 = arith.constant 0 : index
    %8 = vector.load %arg11[%c0_2, %c0_3] : memref<48x128xf32, #tpu.memory_space<vmem>>, vector<16x128xf32>
    tpu.vector_store %arg11[%c0_2, %c0_3], %7 {strides = array<i32>} : memref<48x128xf32, #tpu.memory_space<vmem>>, vector<16x128xf32>,
    %c0_4 = arith.constant 0 : index
    %c0_5 = arith.constant 0 : index
    %c0_6 = arith.constant 0 : index
    %9 = vector.load %arg2[%c0_4, %c0_5, %c0_6] : memref<1x16x128xbf16, #tpu.memory_space<vmem>>, vector<1x16x128xbf16>
    %10 = vector.shape_cast %9 : vector<1x16x128xbf16> to vector<16x128xbf16>
    %11 = arith.extf %10 : vector<16x128xbf16> to vector<16x128xf32>
    %c16 = arith.constant 16 : index
    %c0_7 = arith.constant 0 : index
    %12 = vector.load %arg11[%c16, %c0_7] : memref<48x128xf32, #tpu.memory_space<vmem>>, vector<16x128xf32>
    tpu.vector_store %arg11[%c16, %c0_7], %11 {strides = array<i32>} : memref<48x128xf32, #tpu.memory_space<vmem>>, vector<16x128xf32>,
    %c0_8 = arith.constant 0 : index
    %c0_9 = arith.constant 0 : index
    %c0_10 = arith.constant 0 : index
    %13 = vector.load %arg4[%c0_8, %c0_9, %c0_10] : memref<1x16x128xbf16, #tpu.memory_space<vmem>>, vector<1x16x128xbf16>
    %14 = vector.shape_cast %13 : vector<1x16x128xbf16> to vector<16x128xbf16>
    %15 = arith.extf %14 : vector<16x128xbf16> to vector<16x128xf32>
    %c3_i32 = arith.constant 3 : i32
    %16 = arith.cmpi slt, %arg1, %c3_i32 : i32
    %17 = arith.extui %16 : i1 to i32
    %18 = arith.sitofp %17 : i32 to f32
    %19 = vector.broadcast %18 : f32 to vector<16x128xf32>
    %20 = arith.mulf %15, %19 : vector<16x128xf32>
    %c32 = arith.constant 32 : index
    %c0_11 = arith.constant 0 : index
    %21 = vector.load %arg11[%c32, %c0_11] : memref<48x128xf32, #tpu.memory_space<vmem>>, vector<16x128xf32>
    tpu.vector_store %arg11[%c32, %c0_11], %20 {strides = array<i32>} : memref<48x128xf32, #tpu.memory_space<vmem>>, vector<16x128xf32>,
    %c0_12 = arith.constant 0 : index
    %c0_13 = arith.constant 0 : index
    %22 = vector.load %arg11[%c0_12, %c0_13] : memref<48x128xf32, #tpu.memory_space<vmem>>, vector<48x128xf32>
    %cst = arith.constant 0.000000e+00 : f32
    %23 = vector.broadcast %cst : f32 to vector<16x128xf32>
    %c0_14 = arith.constant 0 : index
    %c0_15 = arith.constant 0 : index
    %24 = vector.load %arg12[%c0_14, %c0_15] : memref<16x128xf32, #tpu.memory_space<vmem>>, vector<16x128xf32>
    tpu.vector_store %arg12[%c0_14, %c0_15], %23 {strides = array<i32>} : memref<16x128xf32, #tpu.memory_space<vmem>>, vector<16x128xf32>,
    %c3_i32_16 = arith.constant 3 : i32
    %25 = tpu.dynamic_rotate %22 by %c3_i32_16 dim 0 : vector<48x128xf32>, i32 -> vector<48x128xf32>
    %26 = vector.extract_strided_slice %25 {offsets = [16, 0], sizes = [16, 128], strides = [1, 1]} : vector<48x128xf32> to vector<16x128xf32>
    %27 = arith.truncf %26 : vector<16x128xf32> to vector<16x128xbf16>
    %c0_17 = arith.constant 0 : index
    %c0_18 = arith.constant 0 : index
    %28 = vector.load %arg12[%c0_17, %c0_18] : memref<16x128xf32, #tpu.memory_space<vmem>>, vector<16x128xf32>
    %c0_19 = arith.constant 0 : index
    %c0_20 = arith.constant 0 : index
    %c0_21 = arith.constant 0 : index
    %29 = vector.load %arg7[%c0_19, %c0_20, %c0_21] : memref<7x128x128xbf16, #tpu.memory_space<vmem>>, vector<1x128x128xbf16>
    %30 = vector.shape_cast %29 : vector<1x128x128xbf16> to vector<128x128xbf16>
    %cst_22 = arith.constant dense<0.000000e+00> : vector<16x128xf32>
    %31 = tpu.matmul %27, %30, %cst_22 {dimension_numbers = #tpu.dot_dimension_numbers<[1], [0], [0], [1], [0, 0, 1, 1], [], []>} : vector<16x128xbf16>, vector<128x128xbf16>, vector<16x128xf32> -> vector<16x128xf32>
    %32 = arith.addf %28, %31 : vector<16x128xf32>
    %c0_23 = arith.constant 0 : index
    %c0_24 = arith.constant 0 : index
    %33 = vector.load %arg12[%c0_23, %c0_24] : memref<16x128xf32, #tpu.memory_space<vmem>>, vector<16x128xf32>
    tpu.vector_store %arg12[%c0_23, %c0_24], %32 {strides = array<i32>} : memref<16x128xf32, #tpu.memory_space<vmem>>, vector<16x128xf32>,
    %c2_i32 = arith.constant 2 : i32
    %34 = tpu.dynamic_rotate %22 by %c2_i32 dim 0 : vector<48x128xf32>, i32 -> vector<48x128xf32>
    %35 = vector.extract_strided_slice %34 {offsets = [16, 0], sizes = [16, 128], strides = [1, 1]} : vector<48x128xf32> to vector<16x128xf32>
    %36 = arith.truncf %35 : vector<16x128xf32> to vector<16x128xbf16>
    %c0_25 = arith.constant 0 : index
    %c0_26 = arith.constant 0 : index
    %37 = vector.load %arg12[%c0_25, %c0_26] : memref<16x128xf32, #tpu.memory_space<vmem>>, vector<16x128xf32>
    %c1 = arith.constant 1 : index
    %c0_27 = arith.constant 0 : index
    %c0_28 = arith.constant 0 : index
    %38 = vector.load %arg7[%c1, %c0_27, %c0_28] : memref<7x128x128xbf16, #tpu.memory_space<vmem>>, vector<1x128x128xbf16>
    %39 = vector.shape_cast %38 : vector<1x128x128xbf16> to vector<128x128xbf16>
    %cst_29 = arith.constant dense<0.000000e+00> : vector<16x128xf32>
    %40 = tpu.matmul %36, %39, %cst_29 {dimension_numbers = #tpu.dot_dimension_numbers<[1], [0], [0], [1], [0, 0, 1, 1], [], []>} : vector<16x128xbf16>, vector<128x128xbf16>, vector<16x128xf32> -> vector<16x128xf32>
    %41 = arith.addf %37, %40 : vector<16x128xf32>
    %c0_30 = arith.constant 0 : index
    %c0_31 = arith.constant 0 : index
    %42 = vector.load %arg12[%c0_30, %c0_31] : memref<16x128xf32, #tpu.memory_space<vmem>>, vector<16x128xf32>
    tpu.vector_store %arg12[%c0_30, %c0_31], %41 {strides = array<i32>} : memref<16x128xf32, #tpu.memory_space<vmem>>, vector<16x128xf32>,
    %c1_i32 = arith.constant 1 : i32
    %43 = tpu.dynamic_rotate %22 by %c1_i32 dim 0 : vector<48x128xf32>, i32 -> vector<48x128xf32>
    %44 = vector.extract_strided_slice %43 {offsets = [16, 0], sizes = [16, 128], strides = [1, 1]} : vector<48x128xf32> to vector<16x128xf32>
    %45 = arith.truncf %44 : vector<16x128xf32> to vector<16x128xbf16>
    %c0_32 = arith.constant 0 : index
    %c0_33 = arith.constant 0 : index
    %46 = vector.load %arg12[%c0_32, %c0_33] : memref<16x128xf32, #tpu.memory_space<vmem>>, vector<16x128xf32>
    %c2 = arith.constant 2 : index
    %c0_34 = arith.constant 0 : index
    %c0_35 = arith.constant 0 : index
    %47 = vector.load %arg7[%c2, %c0_34, %c0_35] : memref<7x128x128xbf16, #tpu.memory_space<vmem>>, vector<1x128x128xbf16>
    %48 = vector.shape_cast %47 : vector<1x128x128xbf16> to vector<128x128xbf16>
    %cst_36 = arith.constant dense<0.000000e+00> : vector<16x128xf32>
    %49 = tpu.matmul %45, %48, %cst_36 {dimension_numbers = #tpu.dot_dimension_numbers<[1], [0], [0], [1], [0, 0, 1, 1], [], []>} : vector<16x128xbf16>, vector<128x128xbf16>, vector<16x128xf32> -> vector<16x128xf32>
    %50 = arith.addf %46, %49 : vector<16x128xf32>
    %c0_37 = arith.constant 0 : index
    %c0_38 = arith.constant 0 : index
    %51 = vector.load %arg12[%c0_37, %c0_38] : memref<16x128xf32, #tpu.memory_space<vmem>>, vector<16x128xf32>
    tpu.vector_store %arg12[%c0_37, %c0_38], %50 {strides = array<i32>} : memref<16x128xf32, #tpu.memory_space<vmem>>, vector<16x128xf32>,
    %52 = vector.extract_strided_slice %22 {offsets = [16, 0], sizes = [16, 128], strides = [1, 1]} : vector<48x128xf32> to vector<16x128xf32>
    %53 = arith.truncf %52 : vector<16x128xf32> to vector<16x128xbf16>
    %c0_39 = arith.constant 0 : index
    %c0_40 = arith.constant 0 : index
    %54 = vector.load %arg12[%c0_39, %c0_40] : memref<16x128xf32, #tpu.memory_space<vmem>>, vector<16x128xf32>
    %c3 = arith.constant 3 : index
    %c0_41 = arith.constant 0 : index
    %c0_42 = arith.constant 0 : index
    %55 = vector.load %arg7[%c3, %c0_41, %c0_42] : memref<7x128x128xbf16, #tpu.memory_space<vmem>>, vector<1x128x128xbf16>
    %56 = vector.shape_cast %55 : vector<1x128x128xbf16> to vector<128x128xbf16>
    %cst_43 = arith.constant dense<0.000000e+00> : vector<16x128xf32>
    %57 = tpu.matmul %53, %56, %cst_43 {dimension_numbers = #tpu.dot_dimension_numbers<[1], [0], [0], [1], [0, 0, 1, 1], [], []>} : vector<16x128xbf16>, vector<128x128xbf16>, vector<16x128xf32> -> vector<16x128xf32>
    %58 = arith.addf %54, %57 : vector<16x128xf32>
    %c0_44 = arith.constant 0 : index
    %c0_45 = arith.constant 0 : index
    %59 = vector.load %arg12[%c0_44, %c0_45] : memref<16x128xf32, #tpu.memory_space<vmem>>, vector<16x128xf32>
    tpu.vector_store %arg12[%c0_44, %c0_45], %58 {strides = array<i32>} : memref<16x128xf32, #tpu.memory_space<vmem>>, vector<16x128xf32>,
    %c47_i32 = arith.constant 47 : i32
    %60 = tpu.dynamic_rotate %22 by %c47_i32 dim 0 : vector<48x128xf32>, i32 -> vector<48x128xf32>
    %61 = vector.extract_strided_slice %60 {offsets = [16, 0], sizes = [16, 128], strides = [1, 1]} : vector<48x128xf32> to vector<16x128xf32>
    %62 = arith.truncf %61 : vector<16x128xf32> to vector<16x128xbf16>
    %c0_46 = arith.constant 0 : index
    %c0_47 = arith.constant 0 : index
    %63 = vector.load %arg12[%c0_46, %c0_47] : memref<16x128xf32, #tpu.memory_space<vmem>>, vector<16x128xf32>
    %c4 = arith.constant 4 : index
    %c0_48 = arith.constant 0 : index
    %c0_49 = arith.constant 0 : index
    %64 = vector.load %arg7[%c4, %c0_48, %c0_49] : memref<7x128x128xbf16, #tpu.memory_space<vmem>>, vector<1x128x128xbf16>
    %65 = vector.shape_cast %64 : vector<1x128x128xbf16> to vector<128x128xbf16>
    %cst_50 = arith.constant dense<0.000000e+00> : vector<16x128xf32>
    %66 = tpu.matmul %62, %65, %cst_50 {dimension_numbers = #tpu.dot_dimension_numbers<[1], [0], [0], [1], [0, 0, 1, 1], [], []>} : vector<16x128xbf16>, vector<128x128xbf16>, vector<16x128xf32> -> vector<16x128xf32>
    %67 = arith.addf %63, %66 : vector<16x128xf32>
    %c0_51 = arith.constant 0 : index
    %c0_52 = arith.constant 0 : index
    %68 = vector.load %arg12[%c0_51, %c0_52] : memref<16x128xf32, #tpu.memory_space<vmem>>, vector<16x128xf32>
    tpu.vector_store %arg12[%c0_51, %c0_52], %67 {strides = array<i32>} : memref<16x128xf32, #tpu.memory_space<vmem>>, vector<16x128xf32>,
    %c46_i32 = arith.constant 46 : i32
    %69 = tpu.dynamic_rotate %22 by %c46_i32 dim 0 : vector<48x128xf32>, i32 -> vector<48x128xf32>
    %70 = vector.extract_strided_slice %69 {offsets = [16, 0], sizes = [16, 128], strides = [1, 1]} : vector<48x128xf32> to vector<16x128xf32>
    %71 = arith.truncf %70 : vector<16x128xf32> to vector<16x128xbf16>
    %c0_53 = arith.constant 0 : index
    %c0_54 = arith.constant 0 : index
    %72 = vector.load %arg12[%c0_53, %c0_54] : memref<16x128xf32, #tpu.memory_space<vmem>>, vector<16x128xf32>
    %c5 = arith.constant 5 : index
    %c0_55 = arith.constant 0 : index
    %c0_56 = arith.constant 0 : index
    %73 = vector.load %arg7[%c5, %c0_55, %c0_56] : memref<7x128x128xbf16, #tpu.memory_space<vmem>>, vector<1x128x128xbf16>
    %74 = vector.shape_cast %73 : vector<1x128x128xbf16> to vector<128x128xbf16>
    %cst_57 = arith.constant dense<0.000000e+00> : vector<16x128xf32>
    %75 = tpu.matmul %71, %74, %cst_57 {dimension_numbers = #tpu.dot_dimension_numbers<[1], [0], [0], [1], [0, 0, 1, 1], [], []>} : vector<16x128xbf16>, vector<128x128xbf16>, vector<16x128xf32> -> vector<16x128xf32>
    %76 = arith.addf %72, %75 : vector<16x128xf32>
    %c0_58 = arith.constant 0 : index
    %c0_59 = arith.constant 0 : index
    %77 = vector.load %arg12[%c0_58, %c0_59] : memref<16x128xf32, #tpu.memory_space<vmem>>, vector<16x128xf32>
    tpu.vector_store %arg12[%c0_58, %c0_59], %76 {strides = array<i32>} : memref<16x128xf32, #tpu.memory_space<vmem>>, vector<16x128xf32>,
    %c45_i32 = arith.constant 45 : i32
    %78 = tpu.dynamic_rotate %22 by %c45_i32 dim 0 : vector<48x128xf32>, i32 -> vector<48x128xf32>
    %79 = vector.extract_strided_slice %78 {offsets = [16, 0], sizes = [16, 128], strides = [1, 1]} : vector<48x128xf32> to vector<16x128xf32>
    %80 = arith.truncf %79 : vector<16x128xf32> to vector<16x128xbf16>
    %c0_60 = arith.constant 0 : index
    %c0_61 = arith.constant 0 : index
    %81 = vector.load %arg12[%c0_60, %c0_61] : memref<16x128xf32, #tpu.memory_space<vmem>>, vector<16x128xf32>
    %c6 = arith.constant 6 : index
    %c0_62 = arith.constant 0 : index
    %c0_63 = arith.constant 0 : index
    %82 = vector.load %arg7[%c6, %c0_62, %c0_63] : memref<7x128x128xbf16, #tpu.memory_space<vmem>>, vector<1x128x128xbf16>
    %83 = vector.shape_cast %82 : vector<1x128x128xbf16> to vector<128x128xbf16>
    %cst_64 = arith.constant dense<0.000000e+00> : vector<16x128xf32>
    %84 = tpu.matmul %80, %83, %cst_64 {dimension_numbers = #tpu.dot_dimension_numbers<[1], [0], [0], [1], [0, 0, 1, 1], [], []>} : vector<16x128xbf16>, vector<128x128xbf16>, vector<16x128xf32> -> vector<16x128xf32>
    %85 = arith.addf %81, %84 : vector<16x128xf32>
    %c0_65 = arith.constant 0 : index
    %c0_66 = arith.constant 0 : index
    %86 = vector.load %arg12[%c0_65, %c0_66] : memref<16x128xf32, #tpu.memory_space<vmem>>, vector<16x128xf32>
    tpu.vector_store %arg12[%c0_65, %c0_66], %85 {strides = array<i32>} : memref<16x128xf32, #tpu.memory_space<vmem>>, vector<16x128xf32>,
    %c0_67 = arith.constant 0 : index
    %c0_68 = arith.constant 0 : index
    %87 = vector.load %arg12[%c0_67, %c0_68] : memref<16x128xf32, #tpu.memory_space<vmem>>, vector<16x128xf32>
    %c0_69 = arith.constant 0 : index
    %c0_70 = arith.constant 0 : index
    %88 = vector.load %arg8[%c0_69, %c0_70] : memref<1x128xf32, #tpu.memory_space<vmem>>, vector<1x128xf32>
    %89 = vector.broadcast %88 : vector<1x128xf32> to vector<16x128xf32>
    %90 = arith.addf %87, %89 : vector<16x128xf32>
    %91 = arith.truncf %90 : vector<16x128xf32> to vector<16x128xbf16>
    %c0_71 = arith.constant 0 : index
    %c0_72 = arith.constant 0 : index
    %c0_73 = arith.constant 0 : index
    %92 = vector.load %arg9[%c0_71, %c0_72, %c0_73] : memref<1x16x128xbf16, #tpu.memory_space<vmem>>, vector<1x16x128xbf16>
    %93 = vector.shape_cast %92 : vector<1x16x128xbf16> to vector<16x128xbf16>
    %94 = vector.shape_cast %91 : vector<16x128xbf16> to vector<1x16x128xbf16>
    tpu.vector_store %arg9[%c0_71, %c0_72, %c0_73], %94 {strides = array<i32>} : memref<1x16x128xbf16, #tpu.memory_space<vmem>>, vector<1x16x128xbf16>,
    %cst_74 = arith.constant dense<0.000000e+00> : vector<128xf32>
    %95 = vector.multi_reduction <add>, %90, %cst_74 [0] : vector<16x128xf32> to vector<128xf32>
    %96 = vector.shape_cast %95 : vector<128xf32> to vector<1x128xf32>
    %c0_75 = arith.constant 0 : index
    %c0_76 = arith.constant 0 : index
    %c0_77 = arith.constant 0 : index
    %97 = vector.load %arg10[%c0_75, %c0_76, %c0_77] : memref<1x2x128xf32, #tpu.memory_space<vmem>>, vector<1x1x128xf32>
    %98 = vector.shape_cast %97 : vector<1x1x128xf32> to vector<1x128xf32>
    %99 = vector.shape_cast %96 : vector<1x128xf32> to vector<1x1x128xf32>
    tpu.vector_store %arg10[%c0_75, %c0_76, %c0_77], %99 {strides = array<i32>} : memref<1x2x128xf32, #tpu.memory_space<vmem>>, vector<1x1x128xf32>,
    %100 = arith.mulf %90, %90 : vector<16x128xf32>
    %cst_78 = arith.constant dense<0.000000e+00> : vector<128xf32>
    %101 = vector.multi_reduction <add>, %100, %cst_78 [0] : vector<16x128xf32> to vector<128xf32>
    %102 = vector.shape_cast %101 : vector<128xf32> to vector<1x128xf32>
    %c0_79 = arith.constant 0 : index
    %c1_80 = arith.constant 1 : index
    %c0_81 = arith.constant 0 : index
    %103 = vector.load %arg10[%c0_79, %c1_80, %c0_81] : memref<1x2x128xf32, #tpu.memory_space<vmem>>, vector<1x1x128xf32>
    %104 = vector.shape_cast %103 : vector<1x1x128xf32> to vector<1x128xf32>
    %105 = vector.shape_cast %102 : vector<1x128xf32> to vector<1x1x128xf32>
    tpu.vector_store %arg10[%c0_79, %c1_80, %c0_81], %105 {strides = array<i32>} : memref<1x2x128xf32, #tpu.memory_space<vmem>>, vector<1x1x128xf32>,
    return
  }
  func.func @transform_0(%arg0: i32, %arg1: i32) -> (i32, i32, i32) {
    %c0_i32 = arith.constant 0 : i32
    %c0_i32_0 = arith.constant 0 : i32
    return %arg0, %arg1, %c0_i32 : i32, i32, i32
  }
  func.func @transform_1(%arg0: i32, %arg1: i32) -> (i32, i32, i32) {
    %c1_i32 = arith.constant 1 : i32
    %0 = arith.muli %arg1, %c1_i32 : i32
    %c1_i32_0 = arith.constant 1 : i32
    %1 = arith.subi %0, %c1_i32_0 : i32
    %c0_i32 = arith.constant 0 : i32
    %2 = arith.maxsi %1, %c0_i32 : i32
    %c0_i32_1 = arith.constant 0 : i32
    %c0_i32_2 = arith.constant 0 : i32
    return %arg0, %2, %c0_i32_1 : i32, i32, i32
  }
  func.func @transform_2(%arg0: i32, %arg1: i32) -> (i32, i32, i32) {
    %c1_i32 = arith.constant 1 : i32
    %0 = arith.addi %arg1, %c1_i32 : i32
    %c1_i32_0 = arith.constant 1 : i32
    %1 = arith.muli %0, %c1_i32_0 : i32
    %c3_i32 = arith.constant 3 : i32
    %2 = arith.minsi %1, %c3_i32 : i32
    %c0_i32 = arith.constant 0 : i32
    %c0_i32_1 = arith.constant 0 : i32
    return %arg0, %2, %c0_i32 : i32, i32, i32
  }
  func.func @transform_3(%arg0: i32, %arg1: i32) -> (i32, i32) {
    %c0_i32 = arith.constant 0 : i32
    %c0_i32_0 = arith.constant 0 : i32
    %c0_i32_1 = arith.constant 0 : i32
    return %c0_i32, %c0_i32_0 : i32, i32
  }
  func.func @transform_4(%arg0: i32, %arg1: i32) -> (i32, i32) {
    %c0_i32 = arith.constant 0 : i32
    %c0_i32_0 = arith.constant 0 : i32
    %c0_i32_1 = arith.constant 0 : i32
    return %c0_i32, %c0_i32_0 : i32, i32
  }
  func.func @transform_5(%arg0: i32, %arg1: i32) -> (i32, i32, i32) {
    %c0_i32 = arith.constant 0 : i32
    %c0_i32_0 = arith.constant 0 : i32
    %c0_i32_1 = arith.constant 0 : i32
    %c0_i32_2 = arith.constant 0 : i32
    return %c0_i32, %c0_i32_0, %c0_i32_1 : i32, i32, i32
  }
  func.func @transform_6(%arg0: i32, %arg1: i32) -> (i32, i32) {
    %c0_i32 = arith.constant 0 : i32
    %c0_i32_0 = arith.constant 0 : i32
    %c0_i32_1 = arith.constant 0 : i32
    return %c0_i32, %c0_i32_0 : i32, i32
  }
  func.func @transform_7(%arg0: i32, %arg1: i32) -> (i32, i32, i32) {
    %c0_i32 = arith.constant 0 : i32
    %c0_i32_0 = arith.constant 0 : i32
    return %arg0, %arg1, %c0_i32 : i32, i32, i32
  }
  func.func @transform_8(%arg0: i32, %arg1: i32) -> (i32, i32, i32) {
    %c4_i32 = arith.constant 4 : i32
    %0 = arith.muli %arg0, %c4_i32 : i32
    %1 = arith.addi %0, %arg1 : i32
    %c0_i32 = arith.constant 0 : i32
    %c0_i32_0 = arith.constant 0 : i32
    %c0_i32_1 = arith.constant 0 : i32
    return %1, %c0_i32, %c0_i32_0 : i32, i32, i32
  }
}

</mosaic_0001>

<llo_original>
// kernel: tpu_custom_call.1
$region0: #{tpu_custom_call.1}
  #allocation0 [shape = 'u32[]', space=smem, size = 0x4, offset = 0x4, fixed_abs, tag = 'smem constant byte address 0x4 - core index']
  #allocation1 [shape = 'u32[144,128]{1,0:T(1,128)}', space=vmem, size = 0x12000, scoped, tag = 'internal scratch']
  #allocation2 [shape = 'f32[48,128]{1,0:T(8,128)}', space=vmem, size = 0x6000, scoped, tag = 'scratch operand']
  #allocation3 [shape = 'f32[16,128]{1,0:T(8,128)}', space=vmem, size = 0x2000, scoped, tag = 'scratch operand']
  %s0 = inlined_call_operand.hbm [shape: bf16[2,64,128], index: 0, kind: input, shape index: {}]
  %s1 = inlined_call_operand.hbm [shape: bf16[2,64,128], index: 1, kind: input, shape index: {}]
  %s2 = inlined_call_operand.hbm [shape: bf16[2,64,128], index: 2, kind: input, shape index: {}]
  %s3 = inlined_call_operand.vmem [shape: f32[1,128], index: 3, kind: input, shape index: {}]
  %s4 = inlined_call_operand.vmem [shape: f32[1,128], index: 4, kind: input, shape index: {}]
  %s5 = inlined_call_operand.hbm [shape: bf16[7,128,128], index: 5, kind: input, shape index: {}]
  %s6 = inlined_call_operand.vmem [shape: f32[1,128], index: 6, kind: input, shape index: {}]
  %s7 = inlined_call_operand.hbm [shape: bf16[2,64,128], index: 7, kind: output, shape index: {0}]
  %s8 = inlined_call_operand.hbm [shape: f32[8,2,128], index: 8, kind: output, shape index: {1}]
  %9 = xla_tuple %s7, %s8
  %s10 = sld [smem:[#allocation0]]
  $region85: #{tpu_custom_call.1} parent=0
    _
  %s12 = ssub.s32 1, %s10
  %s13 = scalar_select 0, %s12, %s10
  $region1: #{tpu_custom_call.1} parent=0
    #allocation4 [shape = 'u8[8192]{0}', space=vmem, size = 0x2000, scoped, tag = 'input window, operand 0']
    #allocation5 [shape = 's32[2]{0}', space=sflag, size = 0x8, scoped, tag = 'scoped memory for tpu_custom_call.1']
    #allocation6 [shape = 's32[2]{0}', space=sflag, size = 0x8, scoped, tag = 'scoped memory for tpu_custom_call.1']
    #allocation7 [shape = 'u8[8192]{0}', space=vmem, size = 0x2000, scoped, tag = 'input window, operand 1']
    #allocation8 [shape = 's32[2]{0}', space=sflag, size = 0x8, scoped, tag = 'scoped memory for tpu_custom_call.1']
    #allocation9 [shape = 'u8[8192]{0}', space=vmem, size = 0x2000, scoped, tag = 'input window, operand 2']
    #allocation10 [shape = 'u8[229376]{0}', space=vmem, size = 0x38000, scoped, tag = 'input window, operand 5, single buffered']
    #allocation11 [shape = 's32[1]{0}', space=sflag, size = 0x4, scoped, tag = 'scoped memory for tpu_custom_call.1']
    #allocation12 [shape = 'u8[8192]{0}', space=vmem, size = 0x2000, scoped, tag = 'output window, operand 0']
    #allocation13 [shape = 'u8[2048]{0}', space=vmem, size = 0x800, scoped, tag = 'output window, operand 1']
    #allocation14 [shape = 's32[2]{0}', space=sflag, size = 0x8, scoped, tag = 'scoped memory for tpu_custom_call.1']
    %14 = vsyncpa [#allocation5], 0
    %s15 = scalar_lea.sflag [#allocation5], 1
    %16 = vsyncpa %s15, 0
    %17 = vsyncpa [#allocation8], 0
    %s18 = scalar_lea.sflag [#allocation8], 1
    %19 = vsyncpa %s18, 0
    %20 = vsyncpa [#allocation11], 0
    %21 = vsyncpa [#allocation6], 0
    %s22 = scalar_lea.sflag [#allocation6], 1
    %23 = vsyncpa %s22, 0
    %24 = vsyncpa [#allocation14], 0
    %s25 = scalar_lea.sflag [#allocation14], 1
    %26 = vsyncpa %s25, 0
    loop: start=0, step=1, limit=10
    $region2: #{tpu_custom_call.1} parent=1 // loop_pre_header
      _
    $region3: #{tpu_custom_call.1} parent=1 // loop_header
      %s28 = sphi 0, %s32
      %p29 = scmp.ge.s32.totalorder %s28, 10
      %s35 = sphi 0, %s47
      %s36 = sphi 0, %s43
      %s37 = sphi 0, %s35
      %s38 = sphi 0, %s36
      %s39 = sphi 0, %s37
      %s40 = sphi 0, %s38
      %s52 = sphi 0, %s54
      %s55 = sphi 0, %s52
      %s56 = sphi 0, %s55
      %s72 = sphi 0, %s56
      %s86 = sphi 0, %s88
      %s89 = sphi 0, %s86
      %s90 = sphi 0, %s89
      %s106 = sphi 0, %s90
      %s120 = sphi 0, %s122
      %s123 = sphi 0, %s120
      %s124 = sphi 0, %s123
      %s140 = sphi 0, %s124
      %s144 = sphi 0, %s144
      %s146 = sphi 0, %s144
      %s147 = sphi 0, %s146
      %s161 = sphi 0, %s147
      %s165 = sphi 0, %s165
      %s167 = sphi 0, %s165
      %s168 = sphi 0, %s167
      %s182 = sphi 0, %s168
      %s186 = sphi 0, %s186
      %s188 = sphi 0, %s186
      %s189 = sphi 0, %s188
      %s203 = sphi 0, %s189
      %s207 = sphi 0, %s207
      %s209 = sphi 0, %s207
      %s210 = sphi 0, %s209
      %s224 = sphi 0, %s210
      %s232 = sphi 0, %s234
      %s235 = sphi 0, %s232
      %s236 = sphi 0, %s235
      %s252 = sphi 0, %s236
      %s262 = sphi 0, %s264
      %s265 = sphi 0, %s262
      %s266 = sphi 0, %s265
      %s282 = sphi 0, %s266
    $region4: #{tpu_custom_call.1} parent=1 // loop_header_branch
      %31 = sbr.rel (%p29) target = $region8
    $region5: #{tpu_custom_call.1} parent=1 // loop_body
      %s33 = ssub.s32 %s28, 1
      %s34 = ssub.s32 %s28, 2
      %s41 = sadd.s32 1, %s36
      %p42 = scmp.ge.s32.totalorder %s41, 4
      %s43 = scalar_select %p42, 0, %s41
      %s44 = sadd.s32 1, %s35
      %s45 = scalar_select %p42, %s44, %s35
      %p46 = scmp.ge.s32.totalorder %s45, 2
      %s47 = scalar_select %p46, 0, %s45
      %s48 = ssub.s32 %s35, %s47
      %s49 = ssub.s32 %s36, %s43
      %s50 = sor.u32 %s48, %s49
      %p51 = scmp.eq.s32.totalorder %s50, 0
      %s53 = sadd.s32 %s52, 1
      %s54 = scalar_select %p51, %s52, %s53
      %p57 = pneg %p51
      %p58 = scmp.eq.s32.totalorder %s28, 7
      %p59 = por %p57, %p58
      %p60 = scmp.ne.s32.totalorder %s52, %s55
      %p61 = scmp.eq.s32.totalorder %s28, 0
      %p62 = por %p60, %p61
      %p63 = scmp.ne.s32.totalorder %s52, %s55
      %p64 = scmp.eq.s32.totalorder %s33, 7
      %p65 = por %p63, %p64
      %p66 = scmp.ne.s32.totalorder %s55, %s56
      %p67 = scmp.eq.s32.totalorder %s33, 0
      %p68 = por %p66, %p67
      %p69 = scmp.ne.s32.totalorder %s55, %s56
      %p70 = scmp.eq.s32.totalorder %s34, 7
      %p71 = por %p69, %p70
      %p73 = scmp.ne.s32.totalorder %s56, %s72
      %p74 = scmp.eq.s32.totalorder %s34, 0
      %p75 = por %p73, %p74
      %s76 = ssub.s32 %s36, 1
      %p77 = scmp.gt.s32.totalorder %s76, 0
      %s78 = scalar_select %p77, %s76, 0
      %s79 = ssub.s32 %s43, 1
      %p80 = scmp.gt.s32.totalorder %s79, 0
      %s81 = scalar_select %p80, %s79, 0
      %s82 = ssub.s32 %s35, %s47
      %s83 = ssub.s32 %s78, %s81
      %s84 = sor.u32 %s82, %s83
      %p85 = scmp.eq.s32.totalorder %s84, 0
      %s87 = sadd.s32 %s86, 1
      %s88 = scalar_select %p85, %s86, %s87
      %p91 = pneg %p85
      %p92 = scmp.eq.s32.totalorder %s28, 7
      %p93 = por %p91, %p92
      %p94 = scmp.ne.s32.totalorder %s86, %s89
      %p95 = scmp.eq.s32.totalorder %s28, 0
      %p96 = por %p94, %p95
      %p97 = scmp.ne.s32.totalorder %s86, %s89
      %p98 = scmp.eq.s32.totalorder %s33, 7
      %p99 = por %p97, %p98
      %p100 = scmp.ne.s32.totalorder %s89, %s90
      %p101 = scmp.eq.s32.totalorder %s33, 0
      %p102 = por %p100, %p101
      %p103 = scmp.ne.s32.totalorder %s89, %s90
      %p104 = scmp.eq.s32.totalorder %s34, 7
      %p105 = por %p103, %p104
      %p107 = scmp.ne.s32.totalorder %s90, %s106
      %p108 = scmp.eq.s32.totalorder %s34, 0
      %p109 = por %p107, %p108
      %s110 = sadd.s32 %s36, 1
      %p111 = scmp.lt.s32.totalorder %s110, 3
      %s112 = scalar_select %p111, %s110, 3
      %s113 = sadd.s32 %s43, 1
      %p114 = scmp.lt.s32.totalorder %s113, 3
      %s115 = scalar_select %p114, %s113, 3
      %s116 = ssub.s32 %s35, %s47
      %s117 = ssub.s32 %s112, %s115
      %s118 = sor.u32 %s116, %s117
      %p119 = scmp.eq.s32.totalorder %s118, 0
      %s121 = sadd.s32 %s120, 1
      %s122 = scalar_select %p119, %s120, %s121
      %p125 = pneg %p119
      %p126 = scmp.eq.s32.totalorder %s28, 7
      %p127 = por %p125, %p126
      %p128 = scmp.ne.s32.totalorder %s120, %s123
      %p129 = scmp.eq.s32.totalorder %s28, 0
      %p130 = por %p128, %p129
      %p131 = scmp.ne.s32.totalorder %s120, %s123
      %p132 = scmp.eq.s32.totalorder %s33, 7
      %p133 = por %p131, %p132
      %p134 = scmp.ne.s32.totalorder %s123, %s124
      %p135 = scmp.eq.s32.totalorder %s33, 0
      %p136 = por %p134, %p135
      %p137 = scmp.ne.s32.totalorder %s123, %s124
      %p138 = scmp.eq.s32.totalorder %s34, 7
      %p139 = por %p137, %p138
      %p141 = scmp.ne.s32.totalorder %s124, %s140
      %p142 = scmp.eq.s32.totalorder %s34, 0
      %p143 = por %p141, %p142
      %s145 = sadd.s32 %s144, 1
      %p148 = scmp.eq.s32.totalorder %s28, 7
      %p149 = scmp.ne.s32.totalorder %s144, %s146
      %p150 = scmp.eq.s32.totalorder %s28, 0
      %p151 = por %p149, %p150
      %p152 = scmp.ne.s32.totalorder %s144, %s146
      %p153 = scmp.eq.s32.totalorder %s33, 7
      %p154 = por %p152, %p153
      %p155 = scmp.ne.s32.totalorder %s146, %s147
      %p156 = scmp.eq.s32.totalorder %s33, 0
      %p157 = por %p155, %p156
      %p158 = scmp.ne.s32.totalorder %s146, %s147
      %p159 = scmp.eq.s32.totalorder %s34, 7
      %p160 = por %p158, %p159
      %p162 = scmp.ne.s32.totalorder %s147, %s161
      %p163 = scmp.eq.s32.totalorder %s34, 0
      %p164 = por %p162, %p163
      %s166 = sadd.s32 %s165, 1
      %p169 = scmp.eq.s32.totalorder %s28, 7
      %p170 = scmp.ne.s32.totalorder %s165, %s167
      %p171 = scmp.eq.s32.totalorder %s28, 0
      %p172 = por %p170, %p171
      %p173 = scmp.ne.s32.totalorder %s165, %s167
      %p174 = scmp.eq.s32.totalorder %s33, 7
      %p175 = por %p173, %p174
      %p176 = scmp.ne.s32.totalorder %s167, %s168
      %p177 = scmp.eq.s32.totalorder %s33, 0
      %p178 = por %p176, %p177
      %p179 = scmp.ne.s32.totalorder %s167, %s168
      %p180 = scmp.eq.s32.totalorder %s34, 7
      %p181 = por %p179, %p180
      %p183 = scmp.ne.s32.totalorder %s168, %s182
      %p184 = scmp.eq.s32.totalorder %s34, 0
      %p185 = por %p183, %p184
      %s187 = sadd.s32 %s186, 1
      %p190 = scmp.eq.s32.totalorder %s28, 7
      %p191 = scmp.ne.s32.totalorder %s186, %s188
      %p192 = scmp.eq.s32.totalorder %s28, 0
      %p193 = por %p191, %p192
      %p194 = scmp.ne.s32.totalorder %s186, %s188
      %p195 = scmp.eq.s32.totalorder %s33, 7
      %p196 = por %p194, %p195
      %p197 = scmp.ne.s32.totalorder %s188, %s189
      %p198 = scmp.eq.s32.totalorder %s33, 0
      %p199 = por %p197, %p198
      %p200 = scmp.ne.s32.totalorder %s188, %s189
      %p201 = scmp.eq.s32.totalorder %s34, 7
      %p202 = por %p200, %p201
      %p204 = scmp.ne.s32.totalorder %s189, %s203
      %p205 = scmp.eq.s32.totalorder %s34, 0
      %p206 = por %p204, %p205
      %s208 = sadd.s32 %s207, 1
      %p211 = scmp.eq.s32.totalorder %s28, 7
      %p212 = scmp.ne.s32.totalorder %s207, %s209
      %p213 = scmp.eq.s32.totalorder %s28, 0
      %p214 = por %p212, %p213
      %p215 = scmp.ne.s32.totalorder %s207, %s209
      %p216 = scmp.eq.s32.totalorder %s33, 7
      %p217 = por %p215, %p216
      %p218 = scmp.ne.s32.totalorder %s209, %s210
      %p219 = scmp.eq.s32.totalorder %s33, 0
      %p220 = por %p218, %p219
      %p221 = scmp.ne.s32.totalorder %s209, %s210
      %p222 = scmp.eq.s32.totalorder %s34, 7
      %p223 = por %p221, %p222
      %p225 = scmp.ne.s32.totalorder %s210, %s224
      %p226 = scmp.eq.s32.totalorder %s34, 0
      %p227 = por %p225, %p226
      %s228 = ssub.s32 %s35, %s47
      %s229 = ssub.s32 %s36, %s43
      %s230 = sor.u32 %s228, %s229
      %p231 = scmp.eq.s32.totalorder %s230, 0
      %s233 = sadd.s32 %s232, 1
      %s234 = scalar_select %p231, %s232, %s233
      %p237 = pneg %p231
      %p238 = scmp.eq.s32.totalorder %s28, 7
      %p239 = por %p237, %p238
      %p240 = scmp.ne.s32.totalorder %s232, %s235
      %p241 = scmp.eq.s32.totalorder %s28, 0
      %p242 = por %p240, %p241
      %p243 = scmp.ne.s32.totalorder %s232, %s235
      %p244 = scmp.eq.s32.totalorder %s33, 7
      %p245 = por %p243, %p244
      %p246 = scmp.ne.s32.totalorder %s235, %s236
      %p247 = scmp.eq.s32.totalorder %s33, 0
      %p248 = por %p246, %p247
      %p249 = scmp.ne.s32.totalorder %s235, %s236
      %p250 = scmp.eq.s32.totalorder %s34, 7
      %p251 = por %p249, %p250
      %p253 = scmp.ne.s32.totalorder %s236, %s252
      %p254 = scmp.eq.s32.totalorder %s34, 0
      %p255 = por %p253, %p254
      %s256 = smul.u32 %s35, 4
      %s257 = sadd.s32 %s256, %s36
      %s258 = smul.u32 %s47, 4
      %s259 = sadd.s32 %s258, %s43
      %s260 = ssub.s32 %s257, %s259
      %p261 = scmp.eq.s32.totalorder %s260, 0
      %s263 = sadd.s32 %s262, 1
      %s264 = scalar_select %p261, %s262, %s263
      %p267 = pneg %p261
      %p268 = scmp.eq.s32.totalorder %s28, 7
      %p269 = por %p267, %p268
      %p270 = scmp.ne.s32.totalorder %s262, %s265
      %p271 = scmp.eq.s32.totalorder %s28, 0
      %p272 = por %p270, %p271
      %p273 = scmp.ne.s32.totalorder %s262, %s265
      %p274 = scmp.eq.s32.totalorder %s33, 7
      %p275 = por %p273, %p274
      %p276 = scmp.ne.s32.totalorder %s265, %s266
      %p277 = scmp.eq.s32.totalorder %s33, 0
      %p278 = por %p276, %p277
      %p279 = scmp.ne.s32.totalorder %s265, %s266
      %p280 = scmp.eq.s32.totalorder %s34, 7
      %p281 = por %p279, %p280
      %p283 = scmp.ne.s32.totalorder %s266, %s282
      %p284 = scmp.eq.s32.totalorder %s34, 0
      %p285 = por %p283, %p284
      %p286 = scmp.le.s32.totalorder 1, %s28
      %p287 = scmp.lt.s32.totalorder %s28, 9
      %p288 = pnand %p286, %p287
      %p289 = pneg %p288
      // Predicated region
      $region9: #{tpu_custom_call.1} parent=5 // pred_check
        _
      $region10: #{tpu_custom_call.1} parent=5 // pred_check_branch
        %291 = sbr.rel (%p288) target = $region12
      $region11: #{tpu_custom_call.1} parent=5 // pred_region
        %s292 = ssub.s32 %s28, 1
        // Predicated region
        $region13: #{tpu_custom_call.1} parent=11 // pred_check
          %p293 = pneg %p157
        $region14: #{tpu_custom_call.1} parent=11 // pred_check_branch
          %295 = sbr.rel (%p293) target = $region16
        $region15: #{tpu_custom_call.1} parent=11 // pred_region
          _
        $region16: #{tpu_custom_call.1} parent=11 // pred_fallthru
          _
        // Predicated region
        $region17: #{tpu_custom_call.1} parent=11 // pred_check
          %p296 = pneg %p178
        $region18: #{tpu_custom_call.1} parent=11 // pred_check_branch
          %298 = sbr.rel (%p296) target = $region20
        $region19: #{tpu_custom_call.1} parent=11 // pred_region
          _
        $region20: #{tpu_custom_call.1} parent=11 // pred_fallthru
          _
        // Predicated region
        $region21: #{tpu_custom_call.1} parent=11 // pred_check
          %p299 = pneg %p199
        $region22: #{tpu_custom_call.1} parent=11 // pred_check_branch
          %301 = sbr.rel (%p299) target = $region24
        $region23: #{tpu_custom_call.1} parent=11 // pred_region
          %s303 = ssub.s32 7168, 7168
          %304 = vsyncadd [#allocation11], %s303
          %s305 = sshll.u32 [#allocation10], 4
          %s306 = int_to_ptr.vmem [resolvable:$true] %s305
          %311 = dma.hbm_to_vmem [thread:$0]  %s5, 7168, %s306, [#allocation11], 64, 64, 4
        $region24: #{tpu_custom_call.1} parent=11 // pred_fallthru
          _
        // Predicated region
        $region25: #{tpu_custom_call.1} parent=11 // pred_check
          %p312 = pneg %p220
        $region26: #{tpu_custom_call.1} parent=11 // pred_check_branch
          %314 = sbr.rel (%p312) target = $region28
        $region27: #{tpu_custom_call.1} parent=11 // pred_region
          _
        $region28: #{tpu_custom_call.1} parent=11 // pred_fallthru
          _
      $region12: #{tpu_custom_call.1} parent=5 // pred_fallthru
        _
      %p315 = scmp.lt.s32.totalorder %s28, 8
      // Predicated region
      $region29: #{tpu_custom_call.1} parent=5 // pred_check
        %p316 = pneg %p315
      $region30: #{tpu_custom_call.1} parent=5 // pred_check_branch
        %318 = sbr.rel (%p316) target = $region32
      $region31: #{tpu_custom_call.1} parent=5 // pred_region
        // Predicated region
        $region33: #{tpu_custom_call.1} parent=31 // pred_check
          %p319 = pneg %p62
        $region34: #{tpu_custom_call.1} parent=31 // pred_check_branch
          %321 = sbr.rel (%p319) target = $region36
        $region35: #{tpu_custom_call.1} parent=31 // pred_region
          %s322 = sand.u32 %s52, 1
          %s323 = scalar_lea.sflag [#allocation5], %s322
          %s324 = sand.u32 %s52, 1
          %s325 = smul.addr %s324, 8
          %s326 = scalar_lea.vmem [#allocation4], %s325
          %s327 = smul.u32 2, %s36
          %s329 = ssub.s32 128, 128
          %330 = vsyncadd %s323, %s329
          %s331 = smul.addr %s35, 8
          %s332 = sadd.s32 %s327, %s331
          %s333 = smul.addr %s332, 64
          %s334 = scalar_lea.hbm %s0, %s333
          %s335 = sshll.u32 %s326, 4
          %s336 = int_to_ptr.vmem [resolvable:$true] %s335
          %341 = dma.hbm_to_vmem [thread:$0]  %s334, 128, %s336, %s323, 64, 64, 4
        $region36: #{tpu_custom_call.1} parent=31 // pred_fallthru
          _
        // Predicated region
        $region37: #{tpu_custom_call.1} parent=31 // pred_check
          %p342 = pneg %p96
        $region38: #{tpu_custom_call.1} parent=31 // pred_check_branch
          %344 = sbr.rel (%p342) target = $region40
        $region39: #{tpu_custom_call.1} parent=31 // pred_region
          %s345 = sand.u32 %s28, 1
          %s346 = scalar_lea.sflag [#allocation8], %s345
          %s347 = sand.u32 %s86, 1
          %s348 = smul.addr %s347, 8
          %s349 = scalar_lea.vmem [#allocation7], %s348
          %s350 = ssub.s32 %s36, 1
          %p351 = scmp.gt.s32.totalorder %s350, 0
          %s352 = scalar_select %p351, %s350, 0
          %s353 = smul.u32 2, %s352
          %s355 = ssub.s32 128, 128
          %356 = vsyncadd %s346, %s355
          %s357 = smul.addr %s35, 8
          %s358 = sadd.s32 %s353, %s357
          %s359 = smul.addr %s358, 64
          %s360 = scalar_lea.hbm %s1, %s359
          %s361 = sshll.u32 %s349, 4
          %s362 = int_to_ptr.vmem [resolvable:$true] %s361
          %367 = dma.hbm_to_vmem [thread:$0]  %s360, 128, %s362, %s346, 64, 64, 4
        $region40: #{tpu_custom_call.1} parent=31 // pred_fallthru
          _
        // Predicated region
        $region41: #{tpu_custom_call.1} parent=31 // pred_check
          %p368 = pneg %p130
        $region42: #{tpu_custom_call.1} parent=31 // pred_check_branch
          %370 = sbr.rel (%p368) target = $region44
        $region43: #{tpu_custom_call.1} parent=31 // pred_region
          %s371 = sand.u32 %s28, 1
          %s372 = scalar_lea.sflag [#allocation8], %s371
          %s373 = sand.u32 %s120, 1
          %s374 = smul.addr %s373, 8
          %s375 = scalar_lea.vmem [#allocation9], %s374
          %s376 = sadd.s32 %s36, 1
          %p377 = scmp.lt.s32.totalorder %s376, 3
          %s378 = scalar_select %p377, %s376, 3
          %s379 = smul.u32 2, %s378
          %s381 = ssub.s32 128, 128
          %382 = vsyncadd %s372, %s381
          %s383 = smul.addr %s35, 8
          %s384 = sadd.s32 %s379, %s383
          %s385 = smul.addr %s384, 64
          %s386 = scalar_lea.hbm %s2, %s385
          %s387 = sshll.u32 %s375, 4
          %s388 = int_to_ptr.vmem [resolvable:$true] %s387
          %393 = dma.hbm_to_vmem [thread:$0]  %s386, 128, %s388, %s372, 64, 64, 4
        $region44: #{tpu_custom_call.1} parent=31 // pred_fallthru
          _
      $region32: #{tpu_custom_call.1} parent=5 // pred_fallthru
        _
      %p394 = scmp.le.s32.totalorder 1, %s28
      %p395 = scmp.lt.s32.totalorder %s28, 9
      %p396 = pnand %p394, %p395
      %p397 = pneg %p396
      // Predicated region
      $region45: #{tpu_custom_call.1} parent=5 // pred_check
        _
      $region46: #{tpu_custom_call.1} parent=5 // pred_check_branch
        %399 = sbr.rel (%p396) target = $region48
      $region47: #{tpu_custom_call.1} parent=5 // pred_region
        %s400 = ssub.s32 %s28, 1
        %s401 = sand.u32 %s55, 1
        %s402 = scalar_lea.sflag [#allocation5], %s401
        %s403 = sand.u32 %s55, 1
        %s404 = smul.addr %s403, 8
        %s405 = scalar_lea.vmem [#allocation4], %s404
        // Predicated region
        $region49: #{tpu_custom_call.1} parent=47 // pred_check
          %p406 = pneg %p68
        $region50: #{tpu_custom_call.1} parent=47 // pred_check_branch
          %408 = sbr.rel (%p406) target = $region52
        $region51: #{tpu_custom_call.1} parent=47 // pred_region
          %409 = dma.done %s402, 128
        $region52: #{tpu_custom_call.1} parent=47 // pred_fallthru
          _
        %s410 = sand.u32 %s33, 1
        %s411 = scalar_lea.sflag [#allocation8], %s410
        %s412 = sand.u32 %s89, 1
        %s413 = smul.addr %s412, 8
        %s414 = scalar_lea.vmem [#allocation7], %s413
        // Predicated region
        $region53: #{tpu_custom_call.1} parent=47 // pred_check
          %p415 = pneg %p102
        $region54: #{tpu_custom_call.1} parent=47 // pred_check_branch
          %417 = sbr.rel (%p415) target = $region56
        $region55: #{tpu_custom_call.1} parent=47 // pred_region
          %418 = dma.done %s411, 128
        $region56: #{tpu_custom_call.1} parent=47 // pred_fallthru
          _
        %s419 = sand.u32 %s33, 1
        %s420 = scalar_lea.sflag [#allocation8], %s419
        %s421 = sand.u32 %s123, 1
        %s422 = smul.addr %s421, 8
        %s423 = scalar_lea.vmem [#allocation9], %s422
        // Predicated region
        $region57: #{tpu_custom_call.1} parent=47 // pred_check
          %p424 = pneg %p136
        $region58: #{tpu_custom_call.1} parent=47 // pred_check_branch
          %426 = sbr.rel (%p424) target = $region60
        $region59: #{tpu_custom_call.1} parent=47 // pred_region
          %427 = dma.done %s420, 128
        $region60: #{tpu_custom_call.1} parent=47 // pred_fallthru
          _
        // Predicated region
        $region61: #{tpu_custom_call.1} parent=47 // pred_check
          %p428 = pneg %p199
        $region62: #{tpu_custom_call.1} parent=47 // pred_check_branch
          %430 = sbr.rel (%p428) target = $region64
        $region63: #{tpu_custom_call.1} parent=47 // pred_region
          %431 = dma.done [#allocation11], 7168
        $region64: #{tpu_custom_call.1} parent=47 // pred_fallthru
          _
        %s432 = sand.u32 %s55, 1
        %s433 = scalar_lea.sflag [#allocation5], %s432
        %s434 = sand.u32 %s55, 1
        %s435 = smul.addr %s434, 8
        %s436 = scalar_lea.vmem [#allocation4], %s435
        %p437 = pneg %p68
        %p438 = pneg %p65
        %s439 = sand.u32 %s33, 1
        %s440 = scalar_lea.sflag [#allocation8], %s439
        %s441 = sand.u32 %s89, 1
        %s442 = smul.addr %s441, 8
        %s443 = scalar_lea.vmem [#allocation7], %s442
        %p444 = pneg %p102
        %p445 = pneg %p99
        %s446 = sand.u32 %s33, 1
        %s447 = scalar_lea.sflag [#allocation8], %s446
        %s448 = sand.u32 %s123, 1
        %s449 = smul.addr %s448, 8
        %s450 = scalar_lea.vmem [#allocation9], %s449
        %p451 = pneg %p136
        %p452 = pneg %p133
        %p453 = pneg %p157
        %p454 = pneg %p154
        %p455 = pneg %p178
        %p456 = pneg %p175
        %p457 = pneg %p199
        %p458 = pneg %p196
        %p459 = pneg %p220
        %p460 = pneg %p217
        %p461 = pneg %p248
        %p462 = pneg %p245
        %s463 = sand.u32 %s235, 1
        %s464 = scalar_lea.sflag [#allocation6], %s463
        %s465 = sand.u32 %s235, 1
        %s466 = smul.addr %s465, 8
        %s467 = scalar_lea.vmem [#allocation12], %s466
        %p468 = pneg %p278
        %p469 = pneg %p275
        %s470 = sand.u32 %s265, 1
        %s471 = scalar_lea.sflag [#allocation14], %s470
        %s472 = sand.u32 %s265, 1
        %s473 = smul.addr %s472, 2
        %s474 = scalar_lea.vmem [#allocation13], %s473
        %s475 = smul.u32 2, %s38
        %s476 = ssub.s32 %s38, 1
        %p477 = scmp.gt.s32.totalorder %s476, 0
        %s478 = scalar_select %p477, %s476, 0
        %s479 = smul.u32 2, %s478
        %s480 = sadd.s32 %s38, 1
        %p481 = scmp.lt.s32.totalorder %s480, 3
        %s482 = scalar_select %p481, %s480, 3
        %s483 = smul.u32 2, %s482
        %s484 = smul.u32 2, %s38
        %s485 = smul.u32 %s37, 4
        %s486 = sadd.s32 %s485, %s38
        %v488 = vld [vmem:[%s414] sm:$0xf]
        %v489 = vld [vmem:[%s414 + $0x4] sm:$0xf]
        %v490 = vunpack.c.l.bf16 %v488
        %v491 = vunpack.c.l.bf16 %v489
        %p492 = scmp.gt.s32.totalorder %s38, 0
        %s493 = scalar_select %p492, 1, 0
        %s494 = scvt.s32.f32 %s493
        %v495 = vstv %s494
        %v496 = vmul.f32 %v490, %v495
        %v497 = vmul.f32 %v491, %v495
        %498 = vst [vmem:[#allocation2] sm:$0xff] %v496
        %499 = vst [vmem:[#allocation2 + $0x8] sm:$0xff] %v497
        %v500 = vld [vmem:[%s405] sm:$0xf]
        %v501 = vld [vmem:[%s405 + $0x4] sm:$0xf]
        %v502 = vunpack.c.l.bf16 %v500
        %v503 = vunpack.c.l.bf16 %v501
        %504 = vst [vmem:[#allocation2 + $0x10] sm:$0xff] %v502
        %505 = vst [vmem:[#allocation2 + $0x18] sm:$0xff] %v503
        %v506 = vld [vmem:[%s423] sm:$0xf]
        %v507 = vld [vmem:[%s423 + $0x4] sm:$0xf]
        %v508 = vunpack.c.l.bf16 %v506
        %v509 = vunpack.c.l.bf16 %v507
        %p510 = scmp.lt.s32.totalorder %s38, 3
        %s511 = scalar_select %p510, 1, 0
        %s512 = scvt.s32.f32 %s511
        %v513 = vstv %s512
        %v514 = vmul.f32 %v508, %v513
        %v515 = vmul.f32 %v509, %v513
        %516 = vst [vmem:[#allocation2 + $0x20] sm:$0xff] %v514
        %517 = vst [vmem:[#allocation2 + $0x28] sm:$0xff] %v515
        %v518 = vld [vmem:[#allocation2 + $0x8] sm:$0xff]
        %v519 = vld [vmem:[#allocation2 + $0x10] sm:$0xff]
        %v520 = vld [vmem:[#allocation2 + $0x18] sm:$0xff]
        %v521 = vld [vmem:[#allocation2 + $0x20] sm:$0xff]
        %522 = vst [vmem:[#allocation3] sm:$0xff] 0.0
        %523 = vst [vmem:[#allocation3 + $0x8] sm:$0xff] 0.0
        %v524 = vrot.slane %v518, 5
        %v525 = vrot.slane %v519, 5
        %v526 = vrot.slane %v520, 5
        %v527 = vlaneseq
        %v528 = vshrl.u32 %v527, 7
        %vm529 = vcmp.lt.s32.totalorder %v528, 3
        %v530 = vsel %vm529, %v525, %v526
        %v531 = vsel %vm529, %v524, %v525
        %v532 = vpack.c.bf16 %v530, %v531
        %v533 = vld [vmem:[#allocation3] sm:$0xff]
        %v534 = vld [vmem:[#allocation3 + $0x8] sm:$0xff]
        %v535 = vld [vmem:[#allocation10] sm:$0xf]
        %v536 = vld [vmem:[#allocation10 + $0x4] sm:$0xf]
        %v537 = vld [vmem:[#allocation10 + $0x8] sm:$0xf]
        %v538 = vld [vmem:[#allocation10 + $0xc] sm:$0xf]
        %v539 = vld [vmem:[#allocation10 + $0x10] sm:$0xf]
        %v540 = vld [vmem:[#allocation10 + $0x14] sm:$0xf]
        %v541 = vld [vmem:[#allocation10 + $0x18] sm:$0xf]
        %v542 = vld [vmem:[#allocation10 + $0x1c] sm:$0xf]
        %v543 = vld [vmem:[#allocation10 + $0x20] sm:$0xf]
        %v544 = vld [vmem:[#allocation10 + $0x24] sm:$0xf]
        %v545 = vld [vmem:[#allocation10 + $0x28] sm:$0xf]
        %v546 = vld [vmem:[#allocation10 + $0x2c] sm:$0xf]
        %v547 = vld [vmem:[#allocation10 + $0x30] sm:$0xf]
        %v548 = vld [vmem:[#allocation10 + $0x34] sm:$0xf]
        %v549 = vld [vmem:[#allocation10 + $0x38] sm:$0xf]
        %v550 = vld [vmem:[#allocation10 + $0x3c] sm:$0xf]
        %v567 = vunpack.c.l.b16 %v535
        %v568 = vunpack.c.l.b16 %v536
        %v569 = vunpack.c.l.b16 %v537
        %v570 = vunpack.c.l.b16 %v538
        %v571 = vunpack.c.l.b16 %v539
        %v572 = vunpack.c.l.b16 %v540
        %v573 = vunpack.c.l.b16 %v541
        %v574 = vunpack.c.l.b16 %v542
        %v575 = vunpack.c.l.b16 %v543
        %v576 = vunpack.c.l.b16 %v544
        %v577 = vunpack.c.l.b16 %v545
        %v578 = vunpack.c.l.b16 %v546
        %v579 = vunpack.c.l.b16 %v547
        %v580 = vunpack.c.l.b16 %v548
        %v581 = vunpack.c.l.b16 %v549
        %v582 = vunpack.c.l.b16 %v550
        %v583 = vpack.c.b16 %v568, %v567
        %v584 = vpack.c.b16 %v570, %v569
        %v585 = vpack.c.b16 %v572, %v571
        %v586 = vpack.c.b16 %v574, %v573
        %v587 = vpack.c.b16 %v576, %v575
        %v588 = vpack.c.b16 %v578, %v577
        %v589 = vpack.c.b16 %v580, %v579
        %v590 = vpack.c.b16 %v582, %v581
        %599 = vmatprep.subr.bf16.mxu0 0
        %600 = vmatpush1.bf16.msra.mxu0 %v583
        %601 = vmatprep.subr.bf16.mxu0 0
        %602 = vmatpush1.bf16.msra.mxu0 %v584
        %603 = vmatprep.subr.bf16.mxu0 0
        %604 = vmatpush1.bf16.msra.mxu0 %v585
        %605 = vmatprep.subr.bf16.mxu0 0
        %606 = vmatpush1.bf16.msra.mxu0 %v586
        %607 = vmatprep.subr.bf16.mxu0 0
        %608 = vmatpush1.bf16.msra.mxu0 %v587
        %609 = vmatprep.subr.bf16.mxu0 0
        %610 = vmatpush1.bf16.msra.mxu0 %v588
        %611 = vmatprep.subr.bf16.mxu0 0
        %612 = vmatpush1.bf16.msra.mxu0 %v589
        %613 = vmatprep.subr.bf16.mxu0 0
        %614 = vmatpush1.bf16.msra.mxu0 %v590
        %615 = vmatprep.subr.bf16.mxu0 0
        %616 = vmatpush1.bf16.msra.mxu0 0
        %617 = vmatprep.subr.bf16.mxu0 0
        %618 = vmatpush1.bf16.msra.mxu0 0
        %619 = vmatprep.subr.bf16.mxu0 0
        %620 = vmatpush1.bf16.msra.mxu0 0
        %621 = vmatprep.subr.bf16.mxu0 0
        %622 = vmatpush1.bf16.msra.mxu0 0
        %623 = vmatprep.subr.bf16.mxu0 0
        %624 = vmatpush1.bf16.msra.mxu0 0
        %625 = vmatprep.subr.bf16.mxu0 0
        %626 = vmatpush1.bf16.msra.mxu0 0
        %627 = vmatprep.subr.bf16.mxu0 0
        %628 = vmatpush1.bf16.msra.mxu0 0
        %629 = vmatprep.subr.bf16.mxu0 0
        %630 = vmatpush1.bf16.msra.mxu0 0
        %631 = vmatprep.mubr.bf16.mxu0 0
        %632 = vmatmul.mubr.bf16.gmra.mrb[0].mxu0 %v532
        %v633 = vpop.f32.mrb[0].mxu0
        %v634 = vadd.f32 0.0, %v633
        %v635 = vpop.f32.mrb[0].mxu0
        %v636 = vpop.f32.mrb[0].mxu0
        %v637 = vadd.f32 0.0, %v636
        %v638 = vpop.f32.mrb[0].mxu0
        %639 = vdwg.mxu0
        %v640 = vadd.f32 %v533, %v634
        %v641 = vadd.f32 %v534, %v637
        %642 = vst [vmem:[#allocation3] sm:$0xff] %v640
        %643 = vst [vmem:[#allocation3 + $0x8] sm:$0xff] %v641
        %v644 = vrot.slane %v518, 6
        %v645 = vrot.slane %v519, 6
        %v646 = vrot.slane %v520, 6
        %vm647 = vcmp.lt.s32.totalorder %v528, 2
        %v648 = vsel %vm647, %v645, %v646
        %v649 = vsel %vm647, %v644, %v645
        %v650 = vpack.c.bf16 %v648, %v649
        %v651 = vld [vmem:[#allocation3] sm:$0xff]
        %v652 = vld [vmem:[#allocation3 + $0x8] sm:$0xff]
        %s653 = scalar_lea.vmem [#allocation10], 64
        %v654 = vld [vmem:[%s653] sm:$0xf]
        %v655 = vld [vmem:[%s653 + $0x4] sm:$0xf]
        %v656 = vld [vmem:[%s653 + $0x8] sm:$0xf]
        %v657 = vld [vmem:[%s653 + $0xc] sm:$0xf]
        %v658 = vld [vmem:[%s653 + $0x10] sm:$0xf]
        %v659 = vld [vmem:[%s653 + $0x14] sm:$0xf]
        %v660 = vld [vmem:[%s653 + $0x18] sm:$0xf]
        %v661 = vld [vmem:[%s653 + $0x1c] sm:$0xf]
        %v662 = vld [vmem:[%s653 + $0x20] sm:$0xf]
        %v663 = vld [vmem:[%s653 + $0x24] sm:$0xf]
        %v664 = vld [vmem:[%s653 + $0x28] sm:$0xf]
        %v665 = vld [vmem:[%s653 + $0x2c] sm:$0xf]
        %v666 = vld [vmem:[%s653 + $0x30] sm:$0xf]
        %v667 = vld [vmem:[%s653 + $0x34] sm:$0xf]
        %v668 = vld [vmem:[%s653 + $0x38] sm:$0xf]
        %v669 = vld [vmem:[%s653 + $0x3c] sm:$0xf]
        %v686 = vunpack.c.l.b16 %v654
        %v687 = vunpack.c.l.b16 %v655
        %v688 = vunpack.c.l.b16 %v656
        %v689 = vunpack.c.l.b16 %v657
        %v690 = vunpack.c.l.b16 %v658
        %v691 = vunpack.c.l.b16 %v659
        %v692 = vunpack.c.l.b16 %v660
        %v693 = vunpack.c.l.b16 %v661
        %v694 = vunpack.c.l.b16 %v662
        %v695 = vunpack.c.l.b16 %v663
        %v696 = vunpack.c.l.b16 %v664
        %v697 = vunpack.c.l.b16 %v665
        %v698 = vunpack.c.l.b16 %v666
        %v699 = vunpack.c.l.b16 %v667
        %v700 = vunpack.c.l.b16 %v668
        %v701 = vunpack.c.l.b16 %v669
        %v702 = vpack.c.b16 %v687, %v686
        %v703 = vpack.c.b16 %v689, %v688
        %v704 = vpack.c.b16 %v691, %v690
        %v705 = vpack.c.b16 %v693, %v692
        %v706 = vpack.c.b16 %v695, %v694
        %v707 = vpack.c.b16 %v697, %v696
        %v708 = vpack.c.b16 %v699, %v698
        %v709 = vpack.c.b16 %v701, %v700
        %718 = vmatprep.subr.bf16.mxu0 0
        %719 = vmatpush1.bf16.msra.mxu0 %v702
        %720 = vmatprep.subr.bf16.mxu0 0
        %721 = vmatpush1.bf16.msra.mxu0 %v703
        %722 = vmatprep.subr.bf16.mxu0 0
        %723 = vmatpush1.bf16.msra.mxu0 %v704
        %724 = vmatprep.subr.bf16.mxu0 0
        %725 = vmatpush1.bf16.msra.mxu0 %v705
        %726 = vmatprep.subr.bf16.mxu0 0
        %727 = vmatpush1.bf16.msra.mxu0 %v706
        %728 = vmatprep.subr.bf16.mxu0 0
        %729 = vmatpush1.bf16.msra.mxu0 %v707
        %730 = vmatprep.subr.bf16.mxu0 0
        %731 = vmatpush1.bf16.msra.mxu0 %v708
        %732 = vmatprep.subr.bf16.mxu0 0
        %733 = vmatpush1.bf16.msra.mxu0 %v709
        %734 = vmatprep.subr.bf16.mxu0 0
        %735 = vmatpush1.bf16.msra.mxu0 0
        %736 = vmatprep.subr.bf16.mxu0 0
        %737 = vmatpush1.bf16.msra.mxu0 0
        %738 = vmatprep.subr.bf16.mxu0 0
        %739 = vmatpush1.bf16.msra.mxu0 0
        %740 = vmatprep.subr.bf16.mxu0 0
        %741 = vmatpush1.bf16.msra.mxu0 0
        %742 = vmatprep.subr.bf16.mxu0 0
        %743 = vmatpush1.bf16.msra.mxu0 0
        %744 = vmatprep.subr.bf16.mxu0 0
        %745 = vmatpush1.bf16.msra.mxu0 0
        %746 = vmatprep.subr.bf16.mxu0 0
        %747 = vmatpush1.bf16.msra.mxu0 0
        %748 = vmatprep.subr.bf16.mxu0 0
        %749 = vmatpush1.bf16.msra.mxu0 0
        %750 = vmatprep.mubr.bf16.mxu0 0
        %751 = vmatmul.mubr.bf16.gmra.mrb[0].mxu0 %v650
        %v752 = vpop.f32.mrb[0].mxu0
        %v753 = vadd.f32 0.0, %v752
        %v754 = vpop.f32.mrb[0].mxu0
        %v755 = vpop.f32.mrb[0].mxu0
        %v756 = vadd.f32 0.0, %v755
        %v757 = vpop.f32.mrb[0].mxu0
        %758 = vdwg.mxu0
        %v759 = vadd.f32 %v651, %v753
        %v760 = vadd.f32 %v652, %v756
        %761 = vst [vmem:[#allocation3] sm:$0xff] %v759
        %762 = vst [vmem:[#allocation3 + $0x8] sm:$0xff] %v760
        %v763 = vrot.slane %v518, 7
        %v764 = vrot.slane %v519, 7
        %v765 = vrot.slane %v520, 7
        %vm766 = vcmp.lt.s32.totalorder %v528, 1
        %v767 = vsel %vm766, %v764, %v765
        %v768 = vsel %vm766, %v763, %v764
        %v769 = vpack.c.bf16 %v767, %v768
        %v770 = vld [vmem:[#allocation3] sm:$0xff]
        %v771 = vld [vmem:[#allocation3 + $0x8] sm:$0xff]
        %s772 = scalar_lea.vmem [#allocation10], 128
        %v773 = vld [vmem:[%s772] sm:$0xf]
        %v774 = vld [vmem:[%s772 + $0x4] sm:$0xf]
        %v775 = vld [vmem:[%s772 + $0x8] sm:$0xf]
        %v776 = vld [vmem:[%s772 + $0xc] sm:$0xf]
        %v777 = vld [vmem:[%s772 + $0x10] sm:$0xf]
        %v778 = vld [vmem:[%s772 + $0x14] sm:$0xf]
        %v779 = vld [vmem:[%s772 + $0x18] sm:$0xf]
        %v780 = vld [vmem:[%s772 + $0x1c] sm:$0xf]
        %v781 = vld [vmem:[%s772 + $0x20] sm:$0xf]
        %v782 = vld [vmem:[%s772 + $0x24] sm:$0xf]
        %v783 = vld [vmem:[%s772 + $0x28] sm:$0xf]
        %v784 = vld [vmem:[%s772 + $0x2c] sm:$0xf]
        %v785 = vld [vmem:[%s772 + $0x30] sm:$0xf]
        %v786 = vld [vmem:[%s772 + $0x34] sm:$0xf]
        %v787 = vld [vmem:[%s772 + $0x38] sm:$0xf]
        %v788 = vld [vmem:[%s772 + $0x3c] sm:$0xf]
        %v805 = vunpack.c.l.b16 %v773
        %v806 = vunpack.c.l.b16 %v774
        %v807 = vunpack.c.l.b16 %v775
        %v808 = vunpack.c.l.b16 %v776
        %v809 = vunpack.c.l.b16 %v777
        %v810 = vunpack.c.l.b16 %v778
        %v811 = vunpack.c.l.b16 %v779
        %v812 = vunpack.c.l.b16 %v780
        %v813 = vunpack.c.l.b16 %v781
        %v814 = vunpack.c.l.b16 %v782
        %v815 = vunpack.c.l.b16 %v783
        %v816 = vunpack.c.l.b16 %v784
        %v817 = vunpack.c.l.b16 %v785
        %v818 = vunpack.c.l.b16 %v786
        %v819 = vunpack.c.l.b16 %v787
        %v820 = vunpack.c.l.b16 %v788
        %v821 = vpack.c.b16 %v806, %v805
        %v822 = vpack.c.b16 %v808, %v807
        %v823 = vpack.c.b16 %v810, %v809
        %v824 = vpack.c.b16 %v812, %v811
        %v825 = vpack.c.b16 %v814, %v813
        %v826 = vpack.c.b16 %v816, %v815
        %v827 = vpack.c.b16 %v818, %v817
        %v828 = vpack.c.b16 %v820, %v819
        %837 = vmatprep.subr.bf16.mxu0 0
        %838 = vmatpush1.bf16.msra.mxu0 %v821
        %839 = vmatprep.subr.bf16.mxu0 0
        %840 = vmatpush1.bf16.msra.mxu0 %v822
        %841 = vmatprep.subr.bf16.mxu0 0
        %842 = vmatpush1.bf16.msra.mxu0 %v823
        %843 = vmatprep.subr.bf16.mxu0 0
        %844 = vmatpush1.bf16.msra.mxu0 %v824
        %845 = vmatprep.subr.bf16.mxu0 0
        %846 = vmatpush1.bf16.msra.mxu0 %v825
        %847 = vmatprep.subr.bf16.mxu0 0
        %848 = vmatpush1.bf16.msra.mxu0 %v826
        %849 = vmatprep.subr.bf16.mxu0 0
        %850 = vmatpush1.bf16.msra.mxu0 %v827
        %851 = vmatprep.subr.bf16.mxu0 0
        %852 = vmatpush1.bf16.msra.mxu0 %v828
        %853 = vmatprep.subr.bf16.mxu0 0
        %854 = vmatpush1.bf16.msra.mxu0 0
        %855 = vmatprep.subr.bf16.mxu0 0
        %856 = vmatpush1.bf16.msra.mxu0 0
        %857 = vmatprep.subr.bf16.mxu0 0
        %858 = vmatpush1.bf16.msra.mxu0 0
        %859 = vmatprep.subr.bf16.mxu0 0
        %860 = vmatpush1.bf16.msra.mxu0 0
        %861 = vmatprep.subr.bf16.mxu0 0
        %862 = vmatpush1.bf16.msra.mxu0 0
        %863 = vmatprep.subr.bf16.mxu0 0
        %864 = vmatpush1.bf16.msra.mxu0 0
        %865 = vmatprep.subr.bf16.mxu0 0
        %866 = vmatpush1.bf16.msra.mxu0 0
        %867 = vmatprep.subr.bf16.mxu0 0
        %868 = vmatpush1.bf16.msra.mxu0 0
        %869 = vmatprep.mubr.bf16.mxu0 0
        %870 = vmatmul.mubr.bf16.gmra.mrb[0].mxu0 %v769
        %v871 = vpop.f32.mrb[0].mxu0
        %v872 = vadd.f32 0.0, %v871
        %v873 = vpop.f32.mrb[0].mxu0
        %v874 = vpop.f32.mrb[0].mxu0
        %v875 = vadd.f32 0.0, %v874
        %v876 = vpop.f32.mrb[0].mxu0
        %877 = vdwg.mxu0
        %v878 = vadd.f32 %v770, %v872
        %v879 = vadd.f32 %v771, %v875
        %880 = vst [vmem:[#allocation3] sm:$0xff] %v878
        %881 = vst [vmem:[#allocation3 + $0x8] sm:$0xff] %v879
        %v882 = vpack.c.bf16 %v520, %v519
        %v883 = vld [vmem:[#allocation3] sm:$0xff]
        %v884 = vld [vmem:[#allocation3 + $0x8] sm:$0xff]
        %s885 = scalar_lea.vmem [#allocation10], 192
        %v886 = vld [vmem:[%s885] sm:$0xf]
        %v887 = vld [vmem:[%s885 + $0x4] sm:$0xf]
        %v888 = vld [vmem:[%s885 + $0x8] sm:$0xf]
        %v889 = vld [vmem:[%s885 + $0xc] sm:$0xf]
        %v890 = vld [vmem:[%s885 + $0x10] sm:$0xf]
        %v891 = vld [vmem:[%s885 + $0x14] sm:$0xf]
        %v892 = vld [vmem:[%s885 + $0x18] sm:$0xf]
        %v893 = vld [vmem:[%s885 + $0x1c] sm:$0xf]
        %v894 = vld [vmem:[%s885 + $0x20] sm:$0xf]
        %v895 = vld [vmem:[%s885 + $0x24] sm:$0xf]
        %v896 = vld [vmem:[%s885 + $0x28] sm:$0xf]
        %v897 = vld [vmem:[%s885 + $0x2c] sm:$0xf]
        %v898 = vld [vmem:[%s885 + $0x30] sm:$0xf]
        %v899 = vld [vmem:[%s885 + $0x34] sm:$0xf]
        %v900 = vld [vmem:[%s885 + $0x38] sm:$0xf]
        %v901 = vld [vmem:[%s885 + $0x3c] sm:$0xf]
        %v918 = vunpack.c.l.b16 %v886
        %v919 = vunpack.c.l.b16 %v887
        %v920 = vunpack.c.l.b16 %v888
        %v921 = vunpack.c.l.b16 %v889
        %v922 = vunpack.c.l.b16 %v890
        %v923 = vunpack.c.l.b16 %v891
        %v924 = vunpack.c.l.b16 %v892
        %v925 = vunpack.c.l.b16 %v893
        %v926 = vunpack.c.l.b16 %v894
        %v927 = vunpack.c.l.b16 %v895
        %v928 = vunpack.c.l.b16 %v896
        %v929 = vunpack.c.l.b16 %v897
        %v930 = vunpack.c.l.b16 %v898
        %v931 = vunpack.c.l.b16 %v899
        %v932 = vunpack.c.l.b16 %v900
        %v933 = vunpack.c.l.b16 %v901
        %v934 = vpack.c.b16 %v919, %v918
        %v935 = vpack.c.b16 %v921, %v920
        %v936 = vpack.c.b16 %v923, %v922
        %v937 = vpack.c.b16 %v925, %v924
        %v938 = vpack.c.b16 %v927, %v926
        %v939 = vpack.c.b16 %v929, %v928
        %v940 = vpack.c.b16 %v931, %v930
        %v941 = vpack.c.b16 %v933, %v932
        %950 = vmatprep.subr.bf16.mxu0 0
        %951 = vmatpush1.bf16.msra.mxu0 %v934
        %952 = vmatprep.subr.bf16.mxu0 0
        %953 = vmatpush1.bf16.msra.mxu0 %v935
        %954 = vmatprep.subr.bf16.mxu0 0
        %955 = vmatpush1.bf16.msra.mxu0 %v936
        %956 = vmatprep.subr.bf16.mxu0 0
        %957 = vmatpush1.bf16.msra.mxu0 %v937
        %958 = vmatprep.subr.bf16.mxu0 0
        %959 = vmatpush1.bf16.msra.mxu0 %v938
        %960 = vmatprep.subr.bf16.mxu0 0
        %961 = vmatpush1.bf16.msra.mxu0 %v939
        %962 = vmatprep.subr.bf16.mxu0 0
        %963 = vmatpush1.bf16.msra.mxu0 %v940
        %964 = vmatprep.subr.bf16.mxu0 0
        %965 = vmatpush1.bf16.msra.mxu0 %v941
        %966 = vmatprep.subr.bf16.mxu0 0
        %967 = vmatpush1.bf16.msra.mxu0 0
        %968 = vmatprep.subr.bf16.mxu0 0
        %969 = vmatpush1.bf16.msra.mxu0 0
        %970 = vmatprep.subr.bf16.mxu0 0
        %971 = vmatpush1.bf16.msra.mxu0 0
        %972 = vmatprep.subr.bf16.mxu0 0
        %973 = vmatpush1.bf16.msra.mxu0 0
        %974 = vmatprep.subr.bf16.mxu0 0
        %975 = vmatpush1.bf16.msra.mxu0 0
        %976 = vmatprep.subr.bf16.mxu0 0
        %977 = vmatpush1.bf16.msra.mxu0 0
        %978 = vmatprep.subr.bf16.mxu0 0
        %979 = vmatpush1.bf16.msra.mxu0 0
        %980 = vmatprep.subr.bf16.mxu0 0
        %981 = vmatpush1.bf16.msra.mxu0 0
        %982 = vmatprep.mubr.bf16.mxu0 0
        %983 = vmatmul.mubr.bf16.gmra.mrb[0].mxu0 %v882
        %v984 = vpop.f32.mrb[0].mxu0
        %v985 = vadd.f32 0.0, %v984
        %v986 = vpop.f32.mrb[0].mxu0
        %v987 = vpop.f32.mrb[0].mxu0
        %v988 = vadd.f32 0.0, %v987
        %v989 = vpop.f32.mrb[0].mxu0
        %990 = vdwg.mxu0
        %v991 = vadd.f32 %v883, %v985
        %v992 = vadd.f32 %v884, %v988
        %993 = vst [vmem:[#allocation3] sm:$0xff] %v991
        %994 = vst [vmem:[#allocation3 + $0x8] sm:$0xff] %v992
        %v995 = vrot.slane %v519, 1
        %v996 = vrot.slane %v520, 1
        %v997 = vrot.slane %v521, 1
        %vm998 = vcmp.lt.s32.totalorder %v528, 7
        %v999 = vsel %vm998, %v996, %v997
        %v1000 = vsel %vm998, %v995, %v996
        %v1001 = vpack.c.bf16 %v999, %v1000
        %v1002 = vld [vmem:[#allocation3] sm:$0xff]
        %v1003 = vld [vmem:[#allocation3 + $0x8] sm:$0xff]
        %s1004 = scalar_lea.vmem [#allocation10], 256
        %v1005 = vld [vmem:[%s1004] sm:$0xf]
        %v1006 = vld [vmem:[%s1004 + $0x4] sm:$0xf]
        %v1007 = vld [vmem:[%s1004 + $0x8] sm:$0xf]
        %v1008 = vld [vmem:[%s1004 + $0xc] sm:$0xf]
        %v1009 = vld [vmem:[%s1004 + $0x10] sm:$0xf]
        %v1010 = vld [vmem:[%s1004 + $0x14] sm:$0xf]
        %v1011 = vld [vmem:[%s1004 + $0x18] sm:$0xf]
        %v1012 = vld [vmem:[%s1004 + $0x1c] sm:$0xf]
        %v1013 = vld [vmem:[%s1004 + $0x20] sm:$0xf]
        %v1014 = vld [vmem:[%s1004 + $0x24] sm:$0xf]
        %v1015 = vld [vmem:[%s1004 + $0x28] sm:$0xf]
        %v1016 = vld [vmem:[%s1004 + $0x2c] sm:$0xf]
        %v1017 = vld [vmem:[%s1004 + $0x30] sm:$0xf]
        %v1018 = vld [vmem:[%s1004 + $0x34] sm:$0xf]
        %v1019 = vld [vmem:[%s1004 + $0x38] sm:$0xf]
        %v1020 = vld [vmem:[%s1004 + $0x3c] sm:$0xf]
        %v1037 = vunpack.c.l.b16 %v1005
        %v1038 = vunpack.c.l.b16 %v1006
        %v1039 = vunpack.c.l.b16 %v1007
        %v1040 = vunpack.c.l.b16 %v1008
        %v1041 = vunpack.c.l.b16 %v1009
        %v1042 = vunpack.c.l.b16 %v1010
        %v1043 = vunpack.c.l.b16 %v1011
        %v1044 = vunpack.c.l.b16 %v1012
        %v1045 = vunpack.c.l.b16 %v1013
        %v1046 = vunpack.c.l.b16 %v1014
        %v1047 = vunpack.c.l.b16 %v1015
        %v1048 = vunpack.c.l.b16 %v1016
        %v1049 = vunpack.c.l.b16 %v1017
        %v1050 = vunpack.c.l.b16 %v1018
        %v1051 = vunpack.c.l.b16 %v1019
        %v1052 = vunpack.c.l.b16 %v1020
        %v1053 = vpack.c.b16 %v1038, %v1037
        %v1054 = vpack.c.b16 %v1040, %v1039
        %v1055 = vpack.c.b16 %v1042, %v1041
        %v1056 = vpack.c.b16 %v1044, %v1043
        %v1057 = vpack.c.b16 %v1046, %v1045
        %v1058 = vpack.c.b16 %v1048, %v1047
        %v1059 = vpack.c.b16 %v1050, %v1049
        %v1060 = vpack.c.b16 %v1052, %v1051
        %1069 = vmatprep.subr.bf16.mxu0 0
        %1070 = vmatpush1.bf16.msra.mxu0 %v1053
        %1071 = vmatprep.subr.bf16.mxu0 0
        %1072 = vmatpush1.bf16.msra.mxu0 %v1054
        %1073 = vmatprep.subr.bf16.mxu0 0
        %1074 = vmatpush1.bf16.msra.mxu0 %v1055
        %1075 = vmatprep.subr.bf16.mxu0 0
        %1076 = vmatpush1.bf16.msra.mxu0 %v1056
        %1077 = vmatprep.subr.bf16.mxu0 0
        %1078 = vmatpush1.bf16.msra.mxu0 %v1057
        %1079 = vmatprep.subr.bf16.mxu0 0
        %1080 = vmatpush1.bf16.msra.mxu0 %v1058
        %1081 = vmatprep.subr.bf16.mxu0 0
        %1082 = vmatpush1.bf16.msra.mxu0 %v1059
        %1083 = vmatprep.subr.bf16.mxu0 0
        %1084 = vmatpush1.bf16.msra.mxu0 %v1060
        %1085 = vmatprep.subr.bf16.mxu0 0
        %1086 = vmatpush1.bf16.msra.mxu0 0
        %1087 = vmatprep.subr.bf16.mxu0 0
        %1088 = vmatpush1.bf16.msra.mxu0 0
        %1089 = vmatprep.subr.bf16.mxu0 0
        %1090 = vmatpush1.bf16.msra.mxu0 0
        %1091 = vmatprep.subr.bf16.mxu0 0
        %1092 = vmatpush1.bf16.msra.mxu0 0
        %1093 = vmatprep.subr.bf16.mxu0 0
        %1094 = vmatpush1.bf16.msra.mxu0 0
        %1095 = vmatprep.subr.bf16.mxu0 0
        %1096 = vmatpush1.bf16.msra.mxu0 0
        %1097 = vmatprep.subr.bf16.mxu0 0
        %1098 = vmatpush1.bf16.msra.mxu0 0
        %1099 = vmatprep.subr.bf16.mxu0 0
        %1100 = vmatpush1.bf16.msra.mxu0 0
        %1101 = vmatprep.mubr.bf16.mxu0 0
        %1102 = vmatmul.mubr.bf16.gmra.mrb[0].mxu0 %v1001
        %v1103 = vpop.f32.mrb[0].mxu0
        %v1104 = vadd.f32 0.0, %v1103
        %v1105 = vpop.f32.mrb[0].mxu0
        %v1106 = vpop.f32.mrb[0].mxu0
        %v1107 = vadd.f32 0.0, %v1106
        %v1108 = vpop.f32.mrb[0].mxu0
        %1109 = vdwg.mxu0
        %v1110 = vadd.f32 %v1002, %v1104
        %v1111 = vadd.f32 %v1003, %v1107
        %1112 = vst [vmem:[#allocation3] sm:$0xff] %v1110
        %1113 = vst [vmem:[#allocation3 + $0x8] sm:$0xff] %v1111
        %v1114 = vrot.slane %v519, 2
        %v1115 = vrot.slane %v520, 2
        %v1116 = vrot.slane %v521, 2
        %vm1117 = vcmp.lt.s32.totalorder %v528, 6
        %v1118 = vsel %vm1117, %v1115, %v1116
        %v1119 = vsel %vm1117, %v1114, %v1115
        %v1120 = vpack.c.bf16 %v1118, %v1119
        %v1121 = vld [vmem:[#allocation3] sm:$0xff]
        %v1122 = vld [vmem:[#allocation3 + $0x8] sm:$0xff]
        %s1123 = scalar_lea.vmem [#allocation10], 320
        %v1124 = vld [vmem:[%s1123] sm:$0xf]
        %v1125 = vld [vmem:[%s1123 + $0x4] sm:$0xf]
        %v1126 = vld [vmem:[%s1123 + $0x8] sm:$0xf]
        %v1127 = vld [vmem:[%s1123 + $0xc] sm:$0xf]
        %v1128 = vld [vmem:[%s1123 + $0x10] sm:$0xf]
        %v1129 = vld [vmem:[%s1123 + $0x14] sm:$0xf]
        %v1130 = vld [vmem:[%s1123 + $0x18] sm:$0xf]
        %v1131 = vld [vmem:[%s1123 + $0x1c] sm:$0xf]
        %v1132 = vld [vmem:[%s1123 + $0x20] sm:$0xf]
        %v1133 = vld [vmem:[%s1123 + $0x24] sm:$0xf]
        %v1134 = vld [vmem:[%s1123 + $0x28] sm:$0xf]
        %v1135 = vld [vmem:[%s1123 + $0x2c] sm:$0xf]
        %v1136 = vld [vmem:[%s1123 + $0x30] sm:$0xf]
        %v1137 = vld [vmem:[%s1123 + $0x34] sm:$0xf]
        %v1138 = vld [vmem:[%s1123 + $0x38] sm:$0xf]
        %v1139 = vld [vmem:[%s1123 + $0x3c] sm:$0xf]
        %v1156 = vunpack.c.l.b16 %v1124
        %v1157 = vunpack.c.l.b16 %v1125
        %v1158 = vunpack.c.l.b16 %v1126
        %v1159 = vunpack.c.l.b16 %v1127
        %v1160 = vunpack.c.l.b16 %v1128
        %v1161 = vunpack.c.l.b16 %v1129
        %v1162 = vunpack.c.l.b16 %v1130
        %v1163 = vunpack.c.l.b16 %v1131
        %v1164 = vunpack.c.l.b16 %v1132
        %v1165 = vunpack.c.l.b16 %v1133
        %v1166 = vunpack.c.l.b16 %v1134
        %v1167 = vunpack.c.l.b16 %v1135
        %v1168 = vunpack.c.l.b16 %v1136
        %v1169 = vunpack.c.l.b16 %v1137
        %v1170 = vunpack.c.l.b16 %v1138
        %v1171 = vunpack.c.l.b16 %v1139
        %v1172 = vpack.c.b16 %v1157, %v1156
        %v1173 = vpack.c.b16 %v1159, %v1158
        %v1174 = vpack.c.b16 %v1161, %v1160
        %v1175 = vpack.c.b16 %v1163, %v1162
        %v1176 = vpack.c.b16 %v1165, %v1164
        %v1177 = vpack.c.b16 %v1167, %v1166
        %v1178 = vpack.c.b16 %v1169, %v1168
        %v1179 = vpack.c.b16 %v1171, %v1170
        %1188 = vmatprep.subr.bf16.mxu0 0
        %1189 = vmatpush1.bf16.msra.mxu0 %v1172
        %1190 = vmatprep.subr.bf16.mxu0 0
        %1191 = vmatpush1.bf16.msra.mxu0 %v1173
        %1192 = vmatprep.subr.bf16.mxu0 0
        %1193 = vmatpush1.bf16.msra.mxu0 %v1174
        %1194 = vmatprep.subr.bf16.mxu0 0
        %1195 = vmatpush1.bf16.msra.mxu0 %v1175
        %1196 = vmatprep.subr.bf16.mxu0 0
        %1197 = vmatpush1.bf16.msra.mxu0 %v1176
        %1198 = vmatprep.subr.bf16.mxu0 0
        %1199 = vmatpush1.bf16.msra.mxu0 %v1177
        %1200 = vmatprep.subr.bf16.mxu0 0
        %1201 = vmatpush1.bf16.msra.mxu0 %v1178
        %1202 = vmatprep.subr.bf16.mxu0 0
        %1203 = vmatpush1.bf16.msra.mxu0 %v1179
        %1204 = vmatprep.subr.bf16.mxu0 0
        %1205 = vmatpush1.bf16.msra.mxu0 0
        %1206 = vmatprep.subr.bf16.mxu0 0
        %1207 = vmatpush1.bf16.msra.mxu0 0
        %1208 = vmatprep.subr.bf16.mxu0 0
        %1209 = vmatpush1.bf16.msra.mxu0 0
        %1210 = vmatprep.subr.bf16.mxu0 0
        %1211 = vmatpush1.bf16.msra.mxu0 0
        %1212 = vmatprep.subr.bf16.mxu0 0
        %1213 = vmatpush1.bf16.msra.mxu0 0
        %1214 = vmatprep.subr.bf16.mxu0 0
        %1215 = vmatpush1.bf16.msra.mxu0 0
        %1216 = vmatprep.subr.bf16.mxu0 0
        %1217 = vmatpush1.bf16.msra.mxu0 0
        %1218 = vmatprep.subr.bf16.mxu0 0
        %1219 = vmatpush1.bf16.msra.mxu0 0
        %1220 = vmatprep.mubr.bf16.mxu0 0
        %1221 = vmatmul.mubr.bf16.gmra.mrb[0].mxu0 %v1120
        %v1222 = vpop.f32.mrb[0].mxu0
        %v1223 = vadd.f32 0.0, %v1222
        %v1224 = vpop.f32.mrb[0].mxu0
        %v1225 = vpop.f32.mrb[0].mxu0
        %v1226 = vadd.f32 0.0, %v1225
        %v1227 = vpop.f32.mrb[0].mxu0
        %1228 = vdwg.mxu0
        %v1229 = vadd.f32 %v1121, %v1223
        %v1230 = vadd.f32 %v1122, %v1226
        %1231 = vst [vmem:[#allocation3] sm:$0xff] %v1229
        %1232 = vst [vmem:[#allocation3 + $0x8] sm:$0xff] %v1230
        %v1233 = vrot.slane %v519, 3
        %v1234 = vrot.slane %v520, 3
        %v1235 = vrot.slane %v521, 3
        %vm1236 = vcmp.lt.s32.totalorder %v528, 5
        %v1237 = vsel %vm1236, %v1234, %v1235
        %v1238 = vsel %vm1236, %v1233, %v1234
        %v1239 = vpack.c.bf16 %v1237, %v1238
        %v1240 = vld [vmem:[#allocation3] sm:$0xff]
        %v1241 = vld [vmem:[#allocation3 + $0x8] sm:$0xff]
        %s1242 = scalar_lea.vmem [#allocation10], 384
        %v1243 = vld [vmem:[%s1242] sm:$0xf]
        %v1244 = vld [vmem:[%s1242 + $0x4] sm:$0xf]
        %v1245 = vld [vmem:[%s1242 + $0x8] sm:$0xf]
        %v1246 = vld [vmem:[%s1242 + $0xc] sm:$0xf]
        %v1247 = vld [vmem:[%s1242 + $0x10] sm:$0xf]
        %v1248 = vld [vmem:[%s1242 + $0x14] sm:$0xf]
        %v1249 = vld [vmem:[%s1242 + $0x18] sm:$0xf]
        %v1250 = vld [vmem:[%s1242 + $0x1c] sm:$0xf]
        %v1251 = vld [vmem:[%s1242 + $0x20] sm:$0xf]
        %v1252 = vld [vmem:[%s1242 + $0x24] sm:$0xf]
        %v1253 = vld [vmem:[%s1242 + $0x28] sm:$0xf]
        %v1254 = vld [vmem:[%s1242 + $0x2c] sm:$0xf]
        %v1255 = vld [vmem:[%s1242 + $0x30] sm:$0xf]
        %v1256 = vld [vmem:[%s1242 + $0x34] sm:$0xf]
        %v1257 = vld [vmem:[%s1242 + $0x38] sm:$0xf]
        %v1258 = vld [vmem:[%s1242 + $0x3c] sm:$0xf]
        %v1275 = vunpack.c.l.b16 %v1243
        %v1276 = vunpack.c.l.b16 %v1244
        %v1277 = vunpack.c.l.b16 %v1245
        %v1278 = vunpack.c.l.b16 %v1246
        %v1279 = vunpack.c.l.b16 %v1247
        %v1280 = vunpack.c.l.b16 %v1248
        %v1281 = vunpack.c.l.b16 %v1249
        %v1282 = vunpack.c.l.b16 %v1250
        %v1283 = vunpack.c.l.b16 %v1251
        %v1284 = vunpack.c.l.b16 %v1252
        %v1285 = vunpack.c.l.b16 %v1253
        %v1286 = vunpack.c.l.b16 %v1254
        %v1287 = vunpack.c.l.b16 %v1255
        %v1288 = vunpack.c.l.b16 %v1256
        %v1289 = vunpack.c.l.b16 %v1257
        %v1290 = vunpack.c.l.b16 %v1258
        %v1291 = vpack.c.b16 %v1276, %v1275
        %v1292 = vpack.c.b16 %v1278, %v1277
        %v1293 = vpack.c.b16 %v1280, %v1279
        %v1294 = vpack.c.b16 %v1282, %v1281
        %v1295 = vpack.c.b16 %v1284, %v1283
        %v1296 = vpack.c.b16 %v1286, %v1285
        %v1297 = vpack.c.b16 %v1288, %v1287
        %v1298 = vpack.c.b16 %v1290, %v1289
        %1307 = vmatprep.subr.bf16.mxu0 0
        %1308 = vmatpush1.bf16.msra.mxu0 %v1291
        %1309 = vmatprep.subr.bf16.mxu0 0
        %1310 = vmatpush1.bf16.msra.mxu0 %v1292
        %1311 = vmatprep.subr.bf16.mxu0 0
        %1312 = vmatpush1.bf16.msra.mxu0 %v1293
        %1313 = vmatprep.subr.bf16.mxu0 0
        %1314 = vmatpush1.bf16.msra.mxu0 %v1294
        %1315 = vmatprep.subr.bf16.mxu0 0
        %1316 = vmatpush1.bf16.msra.mxu0 %v1295
        %1317 = vmatprep.subr.bf16.mxu0 0
        %1318 = vmatpush1.bf16.msra.mxu0 %v1296
        %1319 = vmatprep.subr.bf16.mxu0 0
        %1320 = vmatpush1.bf16.msra.mxu0 %v1297
        %1321 = vmatprep.subr.bf16.mxu0 0
        %1322 = vmatpush1.bf16.msra.mxu0 %v1298
        %1323 = vmatprep.subr.bf16.mxu0 0
        %1324 = vmatpush1.bf16.msra.mxu0 0
        %1325 = vmatprep.subr.bf16.mxu0 0
        %1326 = vmatpush1.bf16.msra.mxu0 0
        %1327 = vmatprep.subr.bf16.mxu0 0
        %1328 = vmatpush1.bf16.msra.mxu0 0
        %1329 = vmatprep.subr.bf16.mxu0 0
        %1330 = vmatpush1.bf16.msra.mxu0 0
        %1331 = vmatprep.subr.bf16.mxu0 0
        %1332 = vmatpush1.bf16.msra.mxu0 0
        %1333 = vmatprep.subr.bf16.mxu0 0
        %1334 = vmatpush1.bf16.msra.mxu0 0
        %1335 = vmatprep.subr.bf16.mxu0 0
        %1336 = vmatpush1.bf16.msra.mxu0 0
        %1337 = vmatprep.subr.bf16.mxu0 0
        %1338 = vmatpush1.bf16.msra.mxu0 0
        %1339 = vmatprep.mubr.bf16.mxu0 0
        %1340 = vmatmul.mubr.bf16.gmra.mrb[0].mxu0 %v1239
        %v1341 = vpop.f32.mrb[0].mxu0
        %v1342 = vadd.f32 0.0, %v1341
        %v1343 = vpop.f32.mrb[0].mxu0
        %v1344 = vpop.f32.mrb[0].mxu0
        %v1345 = vadd.f32 0.0, %v1344
        %v1346 = vpop.f32.mrb[0].mxu0
        %1347 = vdwg.mxu0
        %v1348 = vadd.f32 %v1240, %v1342
        %v1349 = vadd.f32 %v1241, %v1345
        %1350 = vst [vmem:[#allocation3] sm:$0xff] %v1348
        %1351 = vst [vmem:[#allocation3 + $0x8] sm:$0xff] %v1349
        %v1352 = vld [vmem:[#allocation3] sm:$0xff]
        %v1353 = vld [vmem:[#allocation3 + $0x8] sm:$0xff]
        %v1354 = vld [vmem:[%s6] sm:$0x1]
        %v1356 = vlaneseq
        %v1357 = vshrl.u32 %v1356, 7
        %v1358 = vsub.s32 0, %v1357
        %v1359 = vrot.slane %v1354, %v1358
        %v1361 = vadd.f32 %v1352, %v1359
        %v1362 = vadd.f32 %v1353, %v1359
        %v1363 = vpack.c.bf16 %v1362, %v1361
        %v1365 = vunpack.c.l.b16 %v1363
        %v1366 = vunpack.c.h.b16 %v1363
        %v1367 = vpack.c.b16 %v1365, %v1365
        %v1368 = vpack.c.b16 %v1366, %v1366
        %1371 = vst [vmem:[%s467] sm:$0xf] %v1367
        %1372 = vst [vmem:[%s467 + $0x4] sm:$0xf] %v1368
        %v1373 = vadd.f32 %v1361, %v1362
        %v1374 = vrot.slane %v1373, 4
        %v1375 = vadd.f32 %v1373, %v1374
        %v1376 = vrot.slane %v1375, 2
        %v1377 = vadd.f32 %v1375, %v1376
        %v1378 = vrot.slane %v1377, 1
        %v1379 = vadd.f32 %v1377, %v1378
        %1380 = vst [vmem:[%s474] sm:$0x1] %v1379
        %v1381 = vmul.f32 %v1361, %v1361
        %v1382 = vmul.f32 %v1362, %v1362
        %v1383 = vadd.f32 %v1381, %v1382
        %v1384 = vrot.slane %v1383, 4
        %v1385 = vadd.f32 %v1383, %v1384
        %v1386 = vrot.slane %v1385, 2
        %v1387 = vadd.f32 %v1385, %v1386
        %v1388 = vrot.slane %v1387, 1
        %v1389 = vadd.f32 %v1387, %v1388
        %1390 = vst [vmem:[%s474 + $0x1] sm:$0x1] %v1389
        %s1391 = sand.u32 %s235, 1
        %s1392 = scalar_lea.sflag [#allocation6], %s1391
        %s1393 = sand.u32 %s235, 1
        %s1394 = smul.addr %s1393, 8
        %s1395 = scalar_lea.vmem [#allocation12], %s1394
        %s1396 = sand.u32 %s265, 1
        %s1397 = scalar_lea.sflag [#allocation14], %s1396
        %s1398 = sand.u32 %s265, 1
        %s1399 = smul.addr %s1398, 2
        %s1400 = scalar_lea.vmem [#allocation13], %s1399
        // Predicated region
        $region65: #{tpu_custom_call.1} parent=47 // pred_check
          %p1401 = pneg %p245
        $region66: #{tpu_custom_call.1} parent=47 // pred_check_branch
          %1403 = sbr.rel (%p1401) target = $region68
        $region67: #{tpu_custom_call.1} parent=47 // pred_region
          %s1404 = smul.u32 2, %s38
          %s1406 = ssub.s32 128, 128
          %1407 = vsyncadd %s1392, %s1406
          %s1408 = smul.addr %s37, 8
          %s1409 = sadd.s32 %s1404, %s1408
          %s1410 = smul.addr %s1409, 64
          %s1411 = scalar_lea.hbm %s7, %s1410
          %s1412 = sshll.u32 %s1395, 4
          %s1413 = int_to_ptr.vmem [resolvable:$true] %s1412
          %1418 = dma.vmem_to_hbm [thread:$0]  %s1413, 128, %s1411, %s1392, 64, 64, 4
        $region68: #{tpu_custom_call.1} parent=47 // pred_fallthru
          _
        // Predicated region
        $region69: #{tpu_custom_call.1} parent=47 // pred_check
          %p1419 = pneg %p275
        $region70: #{tpu_custom_call.1} parent=47 // pred_check_branch
          %1421 = sbr.rel (%p1419) target = $region72
        $region71: #{tpu_custom_call.1} parent=47 // pred_region
          %s1422 = smul.u32 %s37, 4
          %s1423 = sadd.s32 %s1422, %s38
          %s1425 = ssub.s32 32, 32
          %1426 = vsyncadd %s1397, %s1425
          %s1427 = smul.addr %s1423, 32
          %s1428 = scalar_lea.hbm %s8, %s1427
          %s1430 = sshll.u32 %s1400, 4
          %s1431 = int_to_ptr.vmem [resolvable:$true] %s1430
          %1433 = dma.vmem_to_hbm [thread:$0]  %s1431, 32, %s1428, %s1397
        $region72: #{tpu_custom_call.1} parent=47 // pred_fallthru
          _
      $region48: #{tpu_custom_call.1} parent=5 // pred_fallthru
        _
      %p1434 = scmp.le.s32.totalorder 2, %s28
      // Predicated region
      $region73: #{tpu_custom_call.1} parent=5 // pred_check
        %p1435 = pneg %p1434
      $region74: #{tpu_custom_call.1} parent=5 // pred_check_branch
        %1437 = sbr.rel (%p1435) target = $region76
      $region75: #{tpu_custom_call.1} parent=5 // pred_region
        %s1438 = ssub.s32 %s28, 2
        // Predicated region
        $region77: #{tpu_custom_call.1} parent=75 // pred_check
          %p1439 = pneg %p251
        $region78: #{tpu_custom_call.1} parent=75 // pred_check_branch
          %1441 = sbr.rel (%p1439) target = $region80
        $region79: #{tpu_custom_call.1} parent=75 // pred_region
          %s1442 = sand.u32 %s236, 1
          %s1443 = scalar_lea.sflag [#allocation6], %s1442
          %s1444 = sand.u32 %s236, 1
          %s1445 = smul.addr %s1444, 8
          %s1446 = scalar_lea.vmem [#allocation12], %s1445
          %1447 = dma.done %s1443, 128
        $region80: #{tpu_custom_call.1} parent=75 // pred_fallthru
          _
        // Predicated region
        $region81: #{tpu_custom_call.1} parent=75 // pred_check
          %p1448 = pneg %p281
        $region82: #{tpu_custom_call.1} parent=75 // pred_check_branch
          %1450 = sbr.rel (%p1448) target = $region84
        $region83: #{tpu_custom_call.1} parent=75 // pred_region
          %s1451 = sand.u32 %s266, 1
          %s1452 = scalar_lea.sflag [#allocation14], %s1451
          %s1453 = sand.u32 %s266, 1
          %s1454 = smul.addr %s1453, 2
          %s1455 = scalar_lea.vmem [#allocation13], %s1454
          %1456 = dma.done %s1452, 32
        $region84: #{tpu_custom_call.1} parent=75 // pred_fallthru
          _
      $region76: #{tpu_custom_call.1} parent=5 // pred_fallthru
        _
    $region6: #{tpu_custom_call.1} parent=1 // loop_footer
      %s32 = sadd.s32 1, %s28
    $region7: #{tpu_custom_call.1} parent=1 // loop_footer_branch
      %27 = sbr.rel target = $region3
    $region8: #{tpu_custom_call.1} parent=1 // loop_exit
      _
    %1457 = vsyncpa [#allocation5], 1
    %s1458 = scalar_lea.sflag [#allocation5], 1
    %1459 = vsyncpa %s1458, 1
    %1460 = vsyncpa [#allocation8], 1
    %s1461 = scalar_lea.sflag [#allocation8], 1
    %1462 = vsyncpa %s1461, 1
    %1463 = vsyncpa [#allocation11], 1
    %1464 = vsyncpa [#allocation6], 1
    %s1465 = scalar_lea.sflag [#allocation6], 1
    %1466 = vsyncpa %s1465, 1
    %1467 = vsyncpa [#allocation14], 1
    %s1468 = scalar_lea.sflag [#allocation14], 1
    %1469 = vsyncpa %s1468, 1

</llo_original>
